<compile_context>
chip_gen: v7x
topology: tpu7x:2x2x1
jax: 0.10.0
libtpu: 0.0.40
codegen_flags: <defaults>
</compile_context>

<pallas_src>
import math
import numpy as np

import jax
import jax.numpy as jnp
from jax.experimental import pallas as pl
from jax.experimental.pallas import tpu as pltpu  # noqa: F401  (kept for TPU backend parity)


# ----------------------------- configuration --------------------------------
class Configs:
    seq_len = 12
    pred_len = 4
    d_model = 32
    d_ff = 48
    num_kernels = 2       # Inception_Block_V1 kernel sizes: 1, 3
    top_k = 3


CFG = Configs()
DECOMP_KERNEL = 13
KS_MAX = 2 * (CFG.num_kernels - 1) + 1          # 3
TAPS = KS_MAX * KS_MAX                          # 9


def _round_up(v, m):
    return -(-v // m) * m


# ----------------------------- FFT period pick --------------------------------
def fft_for_period(x, k):
    # Runs eagerly in JAX/NumPy: the selected periods become static Python ints so the
    # fused kernel's constant operator matrices have static shapes.
    # NOTE: because of this the full forward cannot be wrapped in jax.jit end-to-end;
    # everything after the FFT is jitted.
    B, T, N = x.shape
    xf = jnp.fft.rfft(x, axis=1)
    axf = jnp.abs(xf)
    freq = axf.mean(axis=0).mean(axis=-1)
    freq = freq.at[0].set(0.0)
    _, top_idx = jax.lax.top_k(freq, k // 3 * 2)
    freq = freq.at[0].set(1000.0)
    _, low_idx = jax.lax.top_k(-freq, k // 3)
    idx = np.sort(np.concatenate([np.asarray(low_idx), np.asarray(top_idx)]))
    period = T // idx
    period_weight = axf.mean(axis=-1)[:, idx]                   # [B, k]
    return period, period_weight


# ----------------------------- parameters -------------------------------------
def init_params(key, cfg):
    N = cfg.d_model
    Fd = cfg.d_ff
    nk = cfg.num_kernels
    keys = jax.random.split(key, 8)

    def lin(k, fan_in, shape):
        return np.asarray(jax.random.normal(k, shape, jnp.float32)) / np.sqrt(fan_in)

    # MSGRU: rz_gate = Linear(2N -> 2N), h_candidate = Linear(2N -> N); stored [in, out].
    w_rz = lin(keys[0], 2 * N, (2 * N, 2 * N))
    b_rz = lin(keys[1], 2 * N, (2 * N,))
    w_h = lin(keys[2], 2 * N, (2 * N, N))
    b_hc = lin(keys[3], 2 * N, (N,))

    # Zero initial state => r is dead, all state matmuls are dead:
    #   out = (1 - sigmoid(x @ w_xz + b_z)) * tanh(x @ w_xh + b_h)
    w_xz = w_rz[:N, N:]
    b_z = b_rz[N:]
    w_xh = w_h[:N, :]
    c0 = (1.0 - 1.0 / (1.0 + np.exp(-b_z))) * np.tanh(b_hc)     # MSGRU output for zero rows

    # Inception_Block_V1: nk convs (kernel 2i+1, padding i), outputs averaged.
    # Convolution is linear -> pre-average the (center-embedded) weights and biases.
    def inception_eff(kw, kb, cin, cout):
        taps = np.zeros((TAPS, cin, cout), np.float32)
        kws = jax.random.split(kw, nk)
        for i in range(nk):
            ks = 2 * i + 1
            off = (KS_MAX - ks) // 2
            wi = lin(kws[i], cin * ks * ks, (ks, ks, cin, cout))
            for a in range(ks):
                for b in range(ks):
                    taps[(a + off) * KS_MAX + (b + off)] += wi[a, b] / nk
        bias = lin(kb, cin, (nk, cout))
        return taps, bias.mean(axis=0)

    w1_taps, b1 = inception_eff(keys[4], keys[5], N, Fd)        # [9,N,Fd], [Fd]
    w2_taps, b2 = inception_eff(keys[6], keys[7], Fd, N)        # [9,Fd,N], [N]

    return dict(
        # numpy copies used only for host-side constant-operator folding
        c0=c0, w1_taps=w1_taps, b1=b1,
        # device params fed to the kernel: bf16 MXU operands, f32 biases
        wxz=jnp.asarray(w_xz, jnp.bfloat16),
        wxh=jnp.asarray(w_xh, jnp.bfloat16),
        bz=jnp.asarray(b_z[None, :], jnp.float32),
        bh=jnp.asarray(b_hc[None, :], jnp.float32),
        w1_flat=jnp.asarray(w1_taps.reshape(TAPS * N, Fd), jnp.bfloat16),   # tap-major rows
        w2_flat=jnp.asarray(w2_taps.reshape(TAPS * Fd, N), jnp.bfloat16),
        b2=jnp.asarray(b2[None, :], jnp.float32),
    )


# --------------------- stacked constant operator matrices ---------------------
def _decomp_matrix(H, kk=DECOMP_KERNEL):
    """res = (I - MA) along H; MA = moving average, window kk, edge-replicated pad."""
    front = kk - 1 - math.floor((kk - 1) // 2)
    ma = np.zeros((H, H), np.float32)
    for h in range(H):
        for j in range(kk):
            src = min(max(h + j - front, 0), H - 1)
            ma[h, src] += 1.0 / kk
    return np.eye(H, dtype=np.float32) - ma


_OP_CACHE = {}   # keyed on (periods, B, T); assumes params are fixed for process lifetime


def get_stacked_operators(period_list, B, T, params):
    """Fold decomp + zero-time-padding + 3x3 im2col + crop + batch/period stacking into
    constant matrices shared by all k period branches (memoized, device-resident).

    Returns dict with:
      a1     [SM, 9*B*T]  bf16  conv1 spatial operator (taps along columns), period-stacked
      c1     [SM, Fd]     f32   conv1 bias + constant contribution of zero-padded time rows
      s2     [9*B*T, SM]  bf16  conv2 spatial gather + crop (taps along rows), period-stacked
      pw_sel [SM, B*k]    f32   selects softmax(period_weight)[b, i] for each stacked row
    SM = round_up(sum_i B*M_i, 8); alignment-padding rows/columns are exactly zero.
    """
    key = (tuple(int(p) for p in period_list), B, T)
    hit = _OP_CACHE.get(key)
    if hit is not None:
        return hit

    c0, w1_taps, b1 = params["c0"], params["w1_taps"], params["b1"]
    Fd = w1_taps.shape[2]
    k = len(period_list)
    BT = B * T

    Ms = []
    for p in period_list:
        p = int(p)
        L = T if T % p == 0 else (T // p + 1) * p
        Ms.append(L)
    offs = np.cumsum([0] + [B * M for M in Ms]).astype(np.int64)
    SM = _round_up(int(offs[-1]), 8)

    a1_all = np.zeros((SM, TAPS * BT), np.float32)
    c1_all = np.zeros((SM, Fd), np.float32)
    s2_stack = np.zeros((TAPS * BT, SM), np.float32)
    pw_sel = np.zeros((SM, B * k), np.float32)

    for i, p in enumerate(period_list):
        p = int(p)
        M = Ms[i]
        H, W = M // p, p
        Dsp = np.kron(_decomp_matrix(H), np.eye(W, dtype=np.float32))   # [M, M]
        c1_single = np.tile(b1[None, :].astype(np.float32), (M, 1))     # conv1 bias

        for dy in range(KS_MAX):
            for dx in range(KS_MAX):
                tap = dy * KS_MAX + dx
                sh = np.zeros((M, M), np.float32)                       # zero-padded 3x3 gather
                for h in range(H):
                    hi = h + dy - 1
                    if hi < 0 or hi >= H:
                        continue
                    for w in range(W):
                        wi = w + dx - 1
                        if 0 <= wi < W:
                            sh[h * W + w, hi * W + wi] = 1.0
                a = sh @ Dsp                    # series_decomp folded into the conv1 gather
                a1 = a[:, :T]                   # columns hit by real MSGRU rows
                pad_row = a[:, T:].sum(axis=1)  # weight of the constant zero-pad MSGRU rows
                c1_single += np.outer(pad_row, c0 @ w1_taps[tap])
                s2 = sh[:T, :]                  # conv2 gather + crop back to first T steps
                for b in range(B):              # block structure over batch
                    r0 = int(offs[i]) + b * M
                    a1_all[r0:r0 + M, tap * BT + b * T: tap * BT + (b + 1) * T] = a1
                    s2_stack[tap * BT + b * T: tap * BT + (b + 1) * T, r0:r0 + M] = s2

        for b in range(B):
            r0 = int(offs[i]) + b * M
            c1_all[r0:r0 + M] = c1_single
            pw_sel[r0:r0 + M, b * k + i] = 1.0

    # NOTE: 1/13 moving-average coefficients lose ~3 decimal digits in bf16 (accepted).
    ops = dict(
        a1=jnp.asarray(a1_all, jnp.bfloat16),
        c1=jnp.asarray(c1_all, jnp.float32),
        s2=jnp.asarray(s2_stack, jnp.bfloat16),
        pw_sel=jnp.asarray(pw_sel, jnp.float32),
    )
    _OP_CACHE[key] = ops
    return ops


# ----------------------------- fused Pallas kernel -----------------------------
def make_fused_kernel(BT, N, Fd):
    def gelu(v):
        # TODO(synk): reference uses exact erf GELU; tanh approximation differs by <~1e-3
        # (erf lowering in Mosaic is not guaranteed).
        return 0.5 * v * (1.0 + jnp.tanh(0.7978845608028654 * (v + 0.044715 * v * v * v)))

    def kernel(x_ref, wxz_ref, wxh_ref, bz_ref, bh_ref, w1_ref, w2_ref, b2_ref,
               a1_ref, c1_ref, s2_ref, pw_ref, o_ref):
        x = x_ref[...]                                                   # [BT, N] f32
        xb = x.astype(jnp.bfloat16)

        # ---- MSGRU once (zero initial state), two lane-aligned matmuls, tanh-sigmoid ----
        uz = jnp.dot(xb, wxz_ref[...], preferred_element_type=jnp.float32) + bz_ref[...]
        uh = jnp.dot(xb, wxh_ref[...], preferred_element_type=jnp.float32) + bh_ref[...]
        g = (0.5 * (1.0 - jnp.tanh(0.5 * uz))) * jnp.tanh(uh)            # (1-sigmoid)*tanh
        gb = g.astype(jnp.bfloat16)

        # ---- channel-mix products g @ W1_tap, shared by all periods: [9*BT, Fd] ----
        p1 = jnp.concatenate(
            [jnp.dot(gb, w1_ref[t * N:(t + 1) * N, :], preferred_element_type=jnp.float32)
             for t in range(TAPS)], axis=0).astype(jnp.bfloat16)

        # ---- conv1 for ALL periods & batches in ONE matmul (decomp + pad + im2col +
        #      block structure folded into the constant a1 operator); c1 carries the bias
        #      and the zero-padded-time constant.  Then GELU and the softmax period weight.
        y1 = jnp.dot(a1_ref[...], p1, preferred_element_type=jnp.float32) + c1_ref[...]
        z1 = gelu(y1) * pw_ref[...]                                      # [SM, Fd] f32
        z1b = z1.astype(jnp.bfloat16)

        # ---- conv2 spatial gather + crop + weighted period/batch sum in ONE matmul ----
        q2 = jnp.dot(s2_ref[...], z1b, preferred_element_type=jnp.float32)   # [9*BT, Fd]
        q2b = q2.astype(jnp.bfloat16)

        # ---- residual + conv2 bias (softmax weights sum to 1 -> b2 added exactly once),
        #      then the 9 tiny per-tap channel mixes of conv2.
        acc = x + b2_ref[...]
        for t in range(TAPS):
            acc = acc + jnp.dot(q2b[t * BT:(t + 1) * BT, :],
                                w2_ref[t * Fd:(t + 1) * Fd, :],
                                preferred_element_type=jnp.float32)
        o_ref[...] = acc                                                 # only HBM write

    return kernel


# ----------------------------- jitted post-FFT forward -------------------------
@jax.jit
def _post_fft_forward(x, period_weight, pw_sel, wxz, wxh, bz, bh,
                      w1_flat, w2_flat, b2, a1, c1, s2):
    B, T, N = x.shape
    BT = B * T
    Fd = c1.shape[1]
    k = period_weight.shape[1]

    pw = jax.nn.softmax(period_weight.astype(jnp.float32), axis=1)       # [B, k]
    pw_vec = jnp.dot(pw_sel, pw.reshape(B * k, 1))                       # [SM, 1] row scales

    out2d = pl.pallas_call(
        make_fused_kernel(BT, N, Fd),
        out_shape=jax.ShapeDtypeStruct((BT, N), jnp.float32),
    )(x.reshape(BT, N).astype(jnp.float32), wxz, wxh, bz, bh,
      w1_flat, w2_flat, b2, a1, c1, s2, pw_vec)
    return out2d.reshape(B, T, N)


# ----------------------------- forward pass -----------------------------------
def temporal_correlation_forward(x, params, cfg):
    B, T, N = x.shape
    k = cfg.top_k
    assert T == cfg.seq_len + cfg.pred_len
    period_list, period_weight = fft_for_period(x, k)        # eager: static periods
    ops = get_stacked_operators(period_list, B, T, params)   # memoized, device-resident
    return _post_fft_forward(
        x, period_weight, ops["pw_sel"],
        params["wxz"], params["wxh"], params["bz"], params["bh"],
        params["w1_flat"], params["w2_flat"], params["b2"],
        ops["a1"], ops["c1"], ops["s2"])


# ----------------------------------- main --------------------------------------
if __name__ == "__main__":
    key = jax.random.PRNGKey(0)
    kx, kp = jax.random.split(key)
    B = 2
    T = CFG.seq_len + CFG.pred_len
    N = CFG.d_model

    x = jax.random.normal(kx, (B, T, N), jnp.float32)
    params = init_params(kp, CFG)

    y = temporal_correlation_forward(x, params, CFG)
    y = jax.block_until_ready(y)
    # second call exercises the operator memoization + jit cache (no host rebuild/upload)
    y2 = jax.block_until_ready(temporal_correlation_forward(x, params, CFG))

    assert y.shape == (B, T, N)
    assert bool(jnp.all(jnp.isfinite(y)))
    assert bool(jnp.all(jnp.isfinite(y2)))
    print("KERNEL_OK")
</pallas_src>

<mosaic_0001>
module attributes {stable_mosaic.version = 11 : i64} {
  func.func @kernel(%arg0: memref<32x32xf32, #tpu.memory_space<vmem>>, %arg1: memref<32x32xbf16, #tpu.memory_space<vmem>>, %arg2: memref<32x32xbf16, #tpu.memory_space<vmem>>, %arg3: memref<1x32xf32, #tpu.memory_space<vmem>>, %arg4: memref<1x32xf32, #tpu.memory_space<vmem>>, %arg5: memref<288x48xbf16, #tpu.memory_space<vmem>>, %arg6: memref<432x32xbf16, #tpu.memory_space<vmem>>, %arg7: memref<1x32xf32, #tpu.memory_space<vmem>>, %arg8: memref<104x288xbf16, #tpu.memory_space<vmem>>, %arg9: memref<104x48xf32, #tpu.memory_space<vmem>>, %arg10: memref<288x104xbf16, #tpu.memory_space<vmem>>, %arg11: memref<104x1xf32, #tpu.memory_space<vmem>>, %arg12: memref<32x32xf32, #tpu.memory_space<vmem>>) attributes {dimension_semantics = [], scalar_prefetch = 0 : i64, scratch_operands = 0 : i64, tpu.core_type = #tpu.core_type<tc>} {
    %c0 = arith.constant 0 : index
    %c0_0 = arith.constant 0 : index
    %0 = vector.load %arg0[%c0, %c0_0] : memref<32x32xf32, #tpu.memory_space<vmem>>, vector<32x32xf32>
    %1 = arith.truncf %0 : vector<32x32xf32> to vector<32x32xbf16>
    %c0_1 = arith.constant 0 : index
    %c0_2 = arith.constant 0 : index
    %2 = vector.load %arg1[%c0_1, %c0_2] : memref<32x32xbf16, #tpu.memory_space<vmem>>, vector<32x32xbf16>
    %cst = arith.constant dense<0.000000e+00> : vector<32x32xf32>
    %3 = tpu.matmul %1, %2, %cst {dimension_numbers = #tpu.dot_dimension_numbers<[1], [0], [0], [1], [0, 0, 1, 1], [], []>} : vector<32x32xbf16>, vector<32x32xbf16>, vector<32x32xf32> -> vector<32x32xf32>
    %c0_3 = arith.constant 0 : index
    %c0_4 = arith.constant 0 : index
    %4 = vector.load %arg3[%c0_3, %c0_4] : memref<1x32xf32, #tpu.memory_space<vmem>>, vector<1x32xf32>
    %5 = vector.broadcast %4 : vector<1x32xf32> to vector<32x32xf32>
    %6 = arith.addf %3, %5 : vector<32x32xf32>
    %c0_5 = arith.constant 0 : index
    %c0_6 = arith.constant 0 : index
    %7 = vector.load %arg2[%c0_5, %c0_6] : memref<32x32xbf16, #tpu.memory_space<vmem>>, vector<32x32xbf16>
    %cst_7 = arith.constant dense<0.000000e+00> : vector<32x32xf32>
    %8 = tpu.matmul %1, %7, %cst_7 {dimension_numbers = #tpu.dot_dimension_numbers<[1], [0], [0], [1], [0, 0, 1, 1], [], []>} : vector<32x32xbf16>, vector<32x32xbf16>, vector<32x32xf32> -> vector<32x32xf32>
    %c0_8 = arith.constant 0 : index
    %c0_9 = arith.constant 0 : index
    %9 = vector.load %arg4[%c0_8, %c0_9] : memref<1x32xf32, #tpu.memory_space<vmem>>, vector<1x32xf32>
    %10 = vector.broadcast %9 : vector<1x32xf32> to vector<32x32xf32>
    %11 = arith.addf %8, %10 : vector<32x32xf32>
    %cst_10 = arith.constant 5.000000e-01 : f32
    %12 = vector.broadcast %cst_10 : f32 to vector<32x32xf32>
    %13 = arith.mulf %12, %6 : vector<32x32xf32>
    %14 = math.tanh %13 : vector<32x32xf32>
    %cst_11 = arith.constant 1.000000e+00 : f32
    %15 = vector.broadcast %cst_11 : f32 to vector<32x32xf32>
    %16 = arith.subf %15, %14 : vector<32x32xf32>
    %cst_12 = arith.constant 5.000000e-01 : f32
    %17 = vector.broadcast %cst_12 : f32 to vector<32x32xf32>
    %18 = arith.mulf %17, %16 : vector<32x32xf32>
    %19 = math.tanh %11 : vector<32x32xf32>
    %20 = arith.mulf %18, %19 : vector<32x32xf32>
    %21 = arith.truncf %20 : vector<32x32xf32> to vector<32x32xbf16>
    %c0_13 = arith.constant 0 : index
    %c0_14 = arith.constant 0 : index
    %22 = vector.load %arg5[%c0_13, %c0_14] : memref<288x48xbf16, #tpu.memory_space<vmem>>, vector<32x48xbf16>
    %cst_15 = arith.constant dense<0.000000e+00> : vector<32x48xf32>
    %23 = tpu.matmul %21, %22, %cst_15 {dimension_numbers = #tpu.dot_dimension_numbers<[1], [0], [0], [1], [0, 0, 1, 1], [], []>} : vector<32x32xbf16>, vector<32x48xbf16>, vector<32x48xf32> -> vector<32x48xf32>
    %c32 = arith.constant 32 : index
    %c0_16 = arith.constant 0 : index
    %24 = vector.load %arg5[%c32, %c0_16] : memref<288x48xbf16, #tpu.memory_space<vmem>>, vector<32x48xbf16>
    %cst_17 = arith.constant dense<0.000000e+00> : vector<32x48xf32>
    %25 = tpu.matmul %21, %24, %cst_17 {dimension_numbers = #tpu.dot_dimension_numbers<[1], [0], [0], [1], [0, 0, 1, 1], [], []>} : vector<32x32xbf16>, vector<32x48xbf16>, vector<32x48xf32> -> vector<32x48xf32>
    %c64 = arith.constant 64 : index
    %c0_18 = arith.constant 0 : index
    %26 = vector.load %arg5[%c64, %c0_18] : memref<288x48xbf16, #tpu.memory_space<vmem>>, vector<32x48xbf16>
    %cst_19 = arith.constant dense<0.000000e+00> : vector<32x48xf32>
    %27 = tpu.matmul %21, %26, %cst_19 {dimension_numbers = #tpu.dot_dimension_numbers<[1], [0], [0], [1], [0, 0, 1, 1], [], []>} : vector<32x32xbf16>, vector<32x48xbf16>, vector<32x48xf32> -> vector<32x48xf32>
    %c96 = arith.constant 96 : index
    %c0_20 = arith.constant 0 : index
    %28 = vector.load %arg5[%c96, %c0_20] : memref<288x48xbf16, #tpu.memory_space<vmem>>, vector<32x48xbf16>
    %cst_21 = arith.constant dense<0.000000e+00> : vector<32x48xf32>
    %29 = tpu.matmul %21, %28, %cst_21 {dimension_numbers = #tpu.dot_dimension_numbers<[1], [0], [0], [1], [0, 0, 1, 1], [], []>} : vector<32x32xbf16>, vector<32x48xbf16>, vector<32x48xf32> -> vector<32x48xf32>
    %c128 = arith.constant 128 : index
    %c0_22 = arith.constant 0 : index
    %30 = vector.load %arg5[%c128, %c0_22] : memref<288x48xbf16, #tpu.memory_space<vmem>>, vector<32x48xbf16>
    %cst_23 = arith.constant dense<0.000000e+00> : vector<32x48xf32>
    %31 = tpu.matmul %21, %30, %cst_23 {dimension_numbers = #tpu.dot_dimension_numbers<[1], [0], [0], [1], [0, 0, 1, 1], [], []>} : vector<32x32xbf16>, vector<32x48xbf16>, vector<32x48xf32> -> vector<32x48xf32>
    %c160 = arith.constant 160 : index
    %c0_24 = arith.constant 0 : index
    %32 = vector.load %arg5[%c160, %c0_24] : memref<288x48xbf16, #tpu.memory_space<vmem>>, vector<32x48xbf16>
    %cst_25 = arith.constant dense<0.000000e+00> : vector<32x48xf32>
    %33 = tpu.matmul %21, %32, %cst_25 {dimension_numbers = #tpu.dot_dimension_numbers<[1], [0], [0], [1], [0, 0, 1, 1], [], []>} : vector<32x32xbf16>, vector<32x48xbf16>, vector<32x48xf32> -> vector<32x48xf32>
    %c192 = arith.constant 192 : index
    %c0_26 = arith.constant 0 : index
    %34 = vector.load %arg5[%c192, %c0_26] : memref<288x48xbf16, #tpu.memory_space<vmem>>, vector<32x48xbf16>
    %cst_27 = arith.constant dense<0.000000e+00> : vector<32x48xf32>
    %35 = tpu.matmul %21, %34, %cst_27 {dimension_numbers = #tpu.dot_dimension_numbers<[1], [0], [0], [1], [0, 0, 1, 1], [], []>} : vector<32x32xbf16>, vector<32x48xbf16>, vector<32x48xf32> -> vector<32x48xf32>
    %c224 = arith.constant 224 : index
    %c0_28 = arith.constant 0 : index
    %36 = vector.load %arg5[%c224, %c0_28] : memref<288x48xbf16, #tpu.memory_space<vmem>>, vector<32x48xbf16>
    %cst_29 = arith.constant dense<0.000000e+00> : vector<32x48xf32>
    %37 = tpu.matmul %21, %36, %cst_29 {dimension_numbers = #tpu.dot_dimension_numbers<[1], [0], [0], [1], [0, 0, 1, 1], [], []>} : vector<32x32xbf16>, vector<32x48xbf16>, vector<32x48xf32> -> vector<32x48xf32>
    %c256 = arith.constant 256 : index
    %c0_30 = arith.constant 0 : index
    %38 = vector.load %arg5[%c256, %c0_30] : memref<288x48xbf16, #tpu.memory_space<vmem>>, vector<32x48xbf16>
    %cst_31 = arith.constant dense<0.000000e+00> : vector<32x48xf32>
    %39 = tpu.matmul %21, %38, %cst_31 {dimension_numbers = #tpu.dot_dimension_numbers<[1], [0], [0], [1], [0, 0, 1, 1], [], []>} : vector<32x32xbf16>, vector<32x48xbf16>, vector<32x48xf32> -> vector<32x48xf32>
    %40 = tpu.concatenate %23, %25, %27, %29, %31, %33, %35, %37, %39 in 0 : vector<32x48xf32>, vector<32x48xf32>, vector<32x48xf32>, vector<32x48xf32>, vector<32x48xf32>, vector<32x48xf32>, vector<32x48xf32>, vector<32x48xf32>, vector<32x48xf32> -> vector<288x48xf32>
    %41 = arith.truncf %40 : vector<288x48xf32> to vector<288x48xbf16>
    %c0_32 = arith.constant 0 : index
    %c0_33 = arith.constant 0 : index
    %42 = vector.load %arg8[%c0_32, %c0_33] : memref<104x288xbf16, #tpu.memory_space<vmem>>, vector<104x288xbf16>
    %cst_34 = arith.constant dense<0.000000e+00> : vector<104x48xf32>
    %43 = tpu.matmul %42, %41, %cst_34 {dimension_numbers = #tpu.dot_dimension_numbers<[1], [0], [0], [1], [0, 0, 1, 1], [], []>} : vector<104x288xbf16>, vector<288x48xbf16>, vector<104x48xf32> -> vector<104x48xf32>
    %c0_35 = arith.constant 0 : index
    %c0_36 = arith.constant 0 : index
    %44 = vector.load %arg9[%c0_35, %c0_36] : memref<104x48xf32, #tpu.memory_space<vmem>>, vector<104x48xf32>
    %45 = arith.addf %43, %44 : vector<104x48xf32>
    %cst_37 = arith.constant 5.000000e-01 : f32
    %46 = vector.broadcast %cst_37 : f32 to vector<104x48xf32>
    %47 = arith.mulf %46, %45 : vector<104x48xf32>
    %cst_38 = arith.constant 4.471500e-02 : f32
    %48 = vector.broadcast %cst_38 : f32 to vector<104x48xf32>
    %49 = arith.mulf %48, %45 : vector<104x48xf32>
    %50 = arith.mulf %49, %45 : vector<104x48xf32>
    %51 = arith.mulf %50, %45 : vector<104x48xf32>
    %52 = arith.addf %45, %51 : vector<104x48xf32>
    %cst_39 = arith.constant 0.797884583 : f32
    %53 = vector.broadcast %cst_39 : f32 to vector<104x48xf32>
    %54 = arith.mulf %53, %52 : vector<104x48xf32>
    %55 = math.tanh %54 : vector<104x48xf32>
    %cst_40 = arith.constant 1.000000e+00 : f32
    %56 = vector.broadcast %cst_40 : f32 to vector<104x48xf32>
    %57 = arith.addf %56, %55 : vector<104x48xf32>
    %58 = arith.mulf %47, %57 : vector<104x48xf32>
    %c0_41 = arith.constant 0 : index
    %c0_42 = arith.constant 0 : index
    %59 = vector.load %arg11[%c0_41, %c0_42] : memref<104x1xf32, #tpu.memory_space<vmem>>, vector<104x1xf32>
    %60 = vector.broadcast %59 : vector<104x1xf32> to vector<104x48xf32>
    %61 = arith.mulf %58, %60 : vector<104x48xf32>
    %62 = arith.truncf %61 : vector<104x48xf32> to vector<104x48xbf16>
    %c0_43 = arith.constant 0 : index
    %c0_44 = arith.constant 0 : index
    %63 = vector.load %arg10[%c0_43, %c0_44] : memref<288x104xbf16, #tpu.memory_space<vmem>>, vector<288x104xbf16>
    %cst_45 = arith.constant dense<0.000000e+00> : vector<288x48xf32>
    %64 = tpu.matmul %63, %62, %cst_45 {dimension_numbers = #tpu.dot_dimension_numbers<[1], [0], [0], [1], [0, 0, 1, 1], [], []>} : vector<288x104xbf16>, vector<104x48xbf16>, vector<288x48xf32> -> vector<288x48xf32>
    %65 = arith.truncf %64 : vector<288x48xf32> to vector<288x48xbf16>
    %c0_46 = arith.constant 0 : index
    %c0_47 = arith.constant 0 : index
    %66 = vector.load %arg7[%c0_46, %c0_47] : memref<1x32xf32, #tpu.memory_space<vmem>>, vector<1x32xf32>
    %67 = vector.broadcast %66 : vector<1x32xf32> to vector<32x32xf32>
    %68 = arith.addf %0, %67 : vector<32x32xf32>
    %69 = vector.extract_strided_slice %65 {offsets = [0, 0], sizes = [32, 48], strides = [1, 1]} : vector<288x48xbf16> to vector<32x48xbf16>
    %c0_48 = arith.constant 0 : index
    %c0_49 = arith.constant 0 : index
    %70 = vector.load %arg6[%c0_48, %c0_49] : memref<432x32xbf16, #tpu.memory_space<vmem>>, vector<48x32xbf16>
    %cst_50 = arith.constant dense<0.000000e+00> : vector<32x32xf32>
    %71 = tpu.matmul %69, %70, %cst_50 {dimension_numbers = #tpu.dot_dimension_numbers<[1], [0], [0], [1], [0, 0, 1, 1], [], []>} : vector<32x48xbf16>, vector<48x32xbf16>, vector<32x32xf32> -> vector<32x32xf32>
    %72 = arith.addf %68, %71 : vector<32x32xf32>
    %73 = vector.extract_strided_slice %65 {offsets = [32, 0], sizes = [32, 48], strides = [1, 1]} : vector<288x48xbf16> to vector<32x48xbf16>
    %c48 = arith.constant 48 : index
    %c0_51 = arith.constant 0 : index
    %74 = vector.load %arg6[%c48, %c0_51] : memref<432x32xbf16, #tpu.memory_space<vmem>>, vector<48x32xbf16>
    %cst_52 = arith.constant dense<0.000000e+00> : vector<32x32xf32>
    %75 = tpu.matmul %73, %74, %cst_52 {dimension_numbers = #tpu.dot_dimension_numbers<[1], [0], [0], [1], [0, 0, 1, 1], [], []>} : vector<32x48xbf16>, vector<48x32xbf16>, vector<32x32xf32> -> vector<32x32xf32>
    %76 = arith.addf %72, %75 : vector<32x32xf32>
    %77 = vector.extract_strided_slice %65 {offsets = [64, 0], sizes = [32, 48], strides = [1, 1]} : vector<288x48xbf16> to vector<32x48xbf16>
    %c96_53 = arith.constant 96 : index
    %c0_54 = arith.constant 0 : index
    %78 = vector.load %arg6[%c96_53, %c0_54] : memref<432x32xbf16, #tpu.memory_space<vmem>>, vector<48x32xbf16>
    %cst_55 = arith.constant dense<0.000000e+00> : vector<32x32xf32>
    %79 = tpu.matmul %77, %78, %cst_55 {dimension_numbers = #tpu.dot_dimension_numbers<[1], [0], [0], [1], [0, 0, 1, 1], [], []>} : vector<32x48xbf16>, vector<48x32xbf16>, vector<32x32xf32> -> vector<32x32xf32>
    %80 = arith.addf %76, %79 : vector<32x32xf32>
    %81 = vector.extract_strided_slice %65 {offsets = [96, 0], sizes = [32, 48], strides = [1, 1]} : vector<288x48xbf16> to vector<32x48xbf16>
    %c144 = arith.constant 144 : index
    %c0_56 = arith.constant 0 : index
    %82 = vector.load %arg6[%c144, %c0_56] : memref<432x32xbf16, #tpu.memory_space<vmem>>, vector<48x32xbf16>
    %cst_57 = arith.constant dense<0.000000e+00> : vector<32x32xf32>
    %83 = tpu.matmul %81, %82, %cst_57 {dimension_numbers = #tpu.dot_dimension_numbers<[1], [0], [0], [1], [0, 0, 1, 1], [], []>} : vector<32x48xbf16>, vector<48x32xbf16>, vector<32x32xf32> -> vector<32x32xf32>
    %84 = arith.addf %80, %83 : vector<32x32xf32>
    %85 = vector.extract_strided_slice %65 {offsets = [128, 0], sizes = [32, 48], strides = [1, 1]} : vector<288x48xbf16> to vector<32x48xbf16>
    %c192_58 = arith.constant 192 : index
    %c0_59 = arith.constant 0 : index
    %86 = vector.load %arg6[%c192_58, %c0_59] : memref<432x32xbf16, #tpu.memory_space<vmem>>, vector<48x32xbf16>
    %cst_60 = arith.constant dense<0.000000e+00> : vector<32x32xf32>
    %87 = tpu.matmul %85, %86, %cst_60 {dimension_numbers = #tpu.dot_dimension_numbers<[1], [0], [0], [1], [0, 0, 1, 1], [], []>} : vector<32x48xbf16>, vector<48x32xbf16>, vector<32x32xf32> -> vector<32x32xf32>
    %88 = arith.addf %84, %87 : vector<32x32xf32>
    %89 = vector.extract_strided_slice %65 {offsets = [160, 0], sizes = [32, 48], strides = [1, 1]} : vector<288x48xbf16> to vector<32x48xbf16>
    %c240 = arith.constant 240 : index
    %c0_61 = arith.constant 0 : index
    %90 = vector.load %arg6[%c240, %c0_61] : memref<432x32xbf16, #tpu.memory_space<vmem>>, vector<48x32xbf16>
    %cst_62 = arith.constant dense<0.000000e+00> : vector<32x32xf32>
    %91 = tpu.matmul %89, %90, %cst_62 {dimension_numbers = #tpu.dot_dimension_numbers<[1], [0], [0], [1], [0, 0, 1, 1], [], []>} : vector<32x48xbf16>, vector<48x32xbf16>, vector<32x32xf32> -> vector<32x32xf32>
    %92 = arith.addf %88, %91 : vector<32x32xf32>
    %93 = vector.extract_strided_slice %65 {offsets = [192, 0], sizes = [32, 48], strides = [1, 1]} : vector<288x48xbf16> to vector<32x48xbf16>
    %c288 = arith.constant 288 : index
    %c0_63 = arith.constant 0 : index
    %94 = vector.load %arg6[%c288, %c0_63] : memref<432x32xbf16, #tpu.memory_space<vmem>>, vector<48x32xbf16>
    %cst_64 = arith.constant dense<0.000000e+00> : vector<32x32xf32>
    %95 = tpu.matmul %93, %94, %cst_64 {dimension_numbers = #tpu.dot_dimension_numbers<[1], [0], [0], [1], [0, 0, 1, 1], [], []>} : vector<32x48xbf16>, vector<48x32xbf16>, vector<32x32xf32> -> vector<32x32xf32>
    %96 = arith.addf %92, %95 : vector<32x32xf32>
    %97 = vector.extract_strided_slice %65 {offsets = [224, 0], sizes = [32, 48], strides = [1, 1]} : vector<288x48xbf16> to vector<32x48xbf16>
    %c336 = arith.constant 336 : index
    %c0_65 = arith.constant 0 : index
    %98 = vector.load %arg6[%c336, %c0_65] : memref<432x32xbf16, #tpu.memory_space<vmem>>, vector<48x32xbf16>
    %cst_66 = arith.constant dense<0.000000e+00> : vector<32x32xf32>
    %99 = tpu.matmul %97, %98, %cst_66 {dimension_numbers = #tpu.dot_dimension_numbers<[1], [0], [0], [1], [0, 0, 1, 1], [], []>} : vector<32x48xbf16>, vector<48x32xbf16>, vector<32x32xf32> -> vector<32x32xf32>
    %100 = arith.addf %96, %99 : vector<32x32xf32>
    %101 = vector.extract_strided_slice %65 {offsets = [256, 0], sizes = [32, 48], strides = [1, 1]} : vector<288x48xbf16> to vector<32x48xbf16>
    %c384 = arith.constant 384 : index
    %c0_67 = arith.constant 0 : index
    %102 = vector.load %arg6[%c384, %c0_67] : memref<432x32xbf16, #tpu.memory_space<vmem>>, vector<48x32xbf16>
    %cst_68 = arith.constant dense<0.000000e+00> : vector<32x32xf32>
    %103 = tpu.matmul %101, %102, %cst_68 {dimension_numbers = #tpu.dot_dimension_numbers<[1], [0], [0], [1], [0, 0, 1, 1], [], []>} : vector<32x48xbf16>, vector<48x32xbf16>, vector<32x32xf32> -> vector<32x32xf32>
    %104 = arith.addf %100, %103 : vector<32x32xf32>
    %c0_69 = arith.constant 0 : index
    %c0_70 = arith.constant 0 : index
    %105 = vector.load %arg12[%c0_69, %c0_70] : memref<32x32xf32, #tpu.memory_space<vmem>>, vector<32x32xf32>
    tpu.vector_store %arg12[%c0_69, %c0_70], %104 {strides = array<i32>} : memref<32x32xf32, #tpu.memory_space<vmem>>, vector<32x32xf32>,
    return
  }
}

</mosaic_0001>

<llo_original>
// kernel: _post_fft_forward.1
$region0: #{_post_fft_forward.1}
  #allocation0 [shape = 'u32[]', space=smem, size = 0x4, offset = 0x4, fixed_abs, tag = 'smem constant byte address 0x4 - core index']
  #allocation1 [shape = 'u32[144,128]{1,0:T(1,128)}', space=vmem, size = 0x12000, scoped, tag = 'internal scratch']
  %s0 = inlined_call_operand.vmem [shape: f32[32,32], index: 0, kind: input, shape index: {}]
  %s1 = inlined_call_operand.vmem [shape: bf16[32,32], index: 1, kind: input, shape index: {}]
  %s2 = inlined_call_operand.vmem [shape: bf16[32,32], index: 2, kind: input, shape index: {}]
  %s3 = inlined_call_operand.vmem [shape: f32[1,32], index: 3, kind: input, shape index: {}]
  %s4 = inlined_call_operand.vmem [shape: f32[1,32], index: 4, kind: input, shape index: {}]
  %s5 = inlined_call_operand.vmem [shape: bf16[288,48], index: 5, kind: input, shape index: {}]
  %s6 = inlined_call_operand.vmem [shape: bf16[432,32], index: 6, kind: input, shape index: {}]
  %s7 = inlined_call_operand.vmem [shape: f32[1,32], index: 7, kind: input, shape index: {}]
  %s8 = inlined_call_operand.vmem [shape: bf16[104,288], index: 8, kind: input, shape index: {}]
  %s9 = inlined_call_operand.vmem [shape: f32[104,48], index: 9, kind: input, shape index: {}]
  %s10 = inlined_call_operand.vmem [shape: bf16[288,104], index: 10, kind: input, shape index: {}]
  %s11 = inlined_call_operand.vmem [shape: f32[104,1], index: 11, kind: input, shape index: {}]
  %s12 = inlined_call_operand.hbm [shape: f32[32,32], index: 12, kind: output, shape index: {}]
  %s13 = sld [smem:[#allocation0]]
  $region58: #{_post_fft_forward.1} parent=0
    _
  %s15 = ssub.s32 1, %s13
  %s16 = scalar_select 0, %s15, %s13
  $region1: #{_post_fft_forward.1} parent=0
    #allocation2 [shape = 'u8[16384]{0}', space=vmem, size = 0x4000, scoped, tag = 'output window, operand 0, single buffered']
    #allocation3 [shape = 's32[1]{0}', space=sflag, size = 0x4, scoped, tag = 'scoped memory for _post_fft_forward.1']
    %17 = vsyncpa [#allocation3], 0
    // Predicated region
    $region2: #{_post_fft_forward.1} parent=1 // pred_check
      _
    $region3: #{_post_fft_forward.1} parent=1 // pred_check_branch
      %19 = sbr.rel (0) target = $region5
    $region4: #{_post_fft_forward.1} parent=1 // pred_region
      _
    $region5: #{_post_fft_forward.1} parent=1 // pred_fallthru
      _
    // Predicated region
    $region6: #{_post_fft_forward.1} parent=1 // pred_check
      _
    $region7: #{_post_fft_forward.1} parent=1 // pred_check_branch
      %21 = sbr.rel (0) target = $region9
    $region8: #{_post_fft_forward.1} parent=1 // pred_region
      _
    $region9: #{_post_fft_forward.1} parent=1 // pred_fallthru
      _
    // Predicated region
    $region10: #{_post_fft_forward.1} parent=1 // pred_check
      _
    $region11: #{_post_fft_forward.1} parent=1 // pred_check_branch
      %23 = sbr.rel (0) target = $region13
    $region12: #{_post_fft_forward.1} parent=1 // pred_region
      _
    $region13: #{_post_fft_forward.1} parent=1 // pred_fallthru
      _
    // Predicated region
    $region14: #{_post_fft_forward.1} parent=1 // pred_check
      _
    $region15: #{_post_fft_forward.1} parent=1 // pred_check_branch
      %25 = sbr.rel (0) target = $region17
    $region16: #{_post_fft_forward.1} parent=1 // pred_region
      _
    $region17: #{_post_fft_forward.1} parent=1 // pred_fallthru
      _
    // Predicated region
    $region18: #{_post_fft_forward.1} parent=1 // pred_check
      _
    $region19: #{_post_fft_forward.1} parent=1 // pred_check_branch
      %27 = sbr.rel (0) target = $region21
    $region20: #{_post_fft_forward.1} parent=1 // pred_region
      _
    $region21: #{_post_fft_forward.1} parent=1 // pred_fallthru
      _
    // Predicated region
    $region22: #{_post_fft_forward.1} parent=1 // pred_check
      _
    $region23: #{_post_fft_forward.1} parent=1 // pred_check_branch
      %29 = sbr.rel (0) target = $region25
    $region24: #{_post_fft_forward.1} parent=1 // pred_region
      _
    $region25: #{_post_fft_forward.1} parent=1 // pred_fallthru
      _
    // Predicated region
    $region26: #{_post_fft_forward.1} parent=1 // pred_check
      _
    $region27: #{_post_fft_forward.1} parent=1 // pred_check_branch
      %31 = sbr.rel (0) target = $region29
    $region28: #{_post_fft_forward.1} parent=1 // pred_region
      _
    $region29: #{_post_fft_forward.1} parent=1 // pred_fallthru
      _
    // Predicated region
    $region30: #{_post_fft_forward.1} parent=1 // pred_check
      _
    $region31: #{_post_fft_forward.1} parent=1 // pred_check_branch
      %33 = sbr.rel (0) target = $region33
    $region32: #{_post_fft_forward.1} parent=1 // pred_region
      _
    $region33: #{_post_fft_forward.1} parent=1 // pred_fallthru
      _
    // Predicated region
    $region34: #{_post_fft_forward.1} parent=1 // pred_check
      _
    $region35: #{_post_fft_forward.1} parent=1 // pred_check_branch
      %35 = sbr.rel (0) target = $region37
    $region36: #{_post_fft_forward.1} parent=1 // pred_region
      _
    $region37: #{_post_fft_forward.1} parent=1 // pred_fallthru
      _
    // Predicated region
    $region38: #{_post_fft_forward.1} parent=1 // pred_check
      _
    $region39: #{_post_fft_forward.1} parent=1 // pred_check_branch
      %37 = sbr.rel (0) target = $region41
    $region40: #{_post_fft_forward.1} parent=1 // pred_region
      _
    $region41: #{_post_fft_forward.1} parent=1 // pred_fallthru
      _
    // Predicated region
    $region42: #{_post_fft_forward.1} parent=1 // pred_check
      _
    $region43: #{_post_fft_forward.1} parent=1 // pred_check_branch
      %39 = sbr.rel (0) target = $region45
    $region44: #{_post_fft_forward.1} parent=1 // pred_region
      _
    $region45: #{_post_fft_forward.1} parent=1 // pred_fallthru
      _
    // Predicated region
    $region46: #{_post_fft_forward.1} parent=1 // pred_check
      _
    $region47: #{_post_fft_forward.1} parent=1 // pred_check_branch
      %41 = sbr.rel (0) target = $region49
    $region48: #{_post_fft_forward.1} parent=1 // pred_region
      _
    $region49: #{_post_fft_forward.1} parent=1 // pred_fallthru
      _
    %v43 = vld [vmem:[%s0] sm:$0xff]
    %v44 = vld [vmem:[%s0 + $0x8] sm:$0xff]
    %v45 = vld [vmem:[%s0 + $0x10] sm:$0xff]
    %v46 = vld [vmem:[%s0 + $0x18] sm:$0xff]
    %v47 = vpack.c.bf16 %v44, %v43
    %v48 = vpack.c.bf16 %v46, %v45
    %v49 = vld [vmem:[%s1] sm:$0xf]
    %v50 = vld [vmem:[%s1 + $0x4] sm:$0xf]
    %v51 = vld [vmem:[%s1 + $0x8] sm:$0xf]
    %v52 = vld [vmem:[%s1 + $0xc] sm:$0xf]
    %v53 = vld [vmem:[%s3] sm:$0x1]
    %v55 = vlaneseq
    %v56 = vshrl.u32 %v55, 7
    %v57 = vsub.s32 0, %v56
    %v58 = vrot.slane %v53, %v57
    %v64 = vunpack.c.l.b16 %v49
    %v65 = vunpack.c.l.b16 %v50
    %v66 = vunpack.c.l.b16 %v51
    %v67 = vunpack.c.l.b16 %v52
    %v68 = vpack.c.b16 %v65, %v64
    %v69 = vpack.c.b16 %v67, %v66
    %vm72 = vcmask 261120
    %v74 = vsel %vm72, %v47, 0
    %v77 = vsel %vm72, %v48, 0
    %79 = vmatprep.subr.bf16.mxu0 0
    %80 = vmatpush1.bf16.msra.mxu0 %v68
    %81 = vmatprep.subr.bf16.mxu0 0
    %82 = vmatpush1.bf16.msra.mxu0 %v69
    %83 = vmatprep.subr.bf16.mxu0 0
    %84 = vmatpush1.bf16.msra.mxu0 0
    %85 = vmatprep.subr.bf16.mxu0 0
    %86 = vmatpush1.bf16.msra.mxu0 0
    %87 = vmatprep.subr.bf16.mxu0 0
    %88 = vmatpush1.bf16.msra.mxu0 0
    %89 = vmatprep.subr.bf16.mxu0 0
    %90 = vmatpush1.bf16.msra.mxu0 0
    %91 = vmatprep.subr.bf16.mxu0 0
    %92 = vmatpush1.bf16.msra.mxu0 0
    %93 = vmatprep.subr.bf16.mxu0 0
    %94 = vmatpush1.bf16.msra.mxu0 0
    %95 = vmatprep.subr.bf16.mxu0 0
    %96 = vmatpush1.bf16.msra.mxu0 0
    %97 = vmatprep.subr.bf16.mxu0 0
    %98 = vmatpush1.bf16.msra.mxu0 0
    %99 = vmatprep.subr.bf16.mxu0 0
    %100 = vmatpush1.bf16.msra.mxu0 0
    %101 = vmatprep.subr.bf16.mxu0 0
    %102 = vmatpush1.bf16.msra.mxu0 0
    %103 = vmatprep.subr.bf16.mxu0 0
    %104 = vmatpush1.bf16.msra.mxu0 0
    %105 = vmatprep.subr.bf16.mxu0 0
    %106 = vmatpush1.bf16.msra.mxu0 0
    %107 = vmatprep.subr.bf16.mxu0 0
    %108 = vmatpush1.bf16.msra.mxu0 0
    %109 = vmatprep.subr.bf16.mxu0 0
    %110 = vmatpush1.bf16.msra.mxu0 0
    %111 = vmatprep.mubr.bf16.mxu0 0
    %112 = vmatmul.mubr.bf16.gmra.mrb[0].mxu0 %v74
    %v113 = vpop.f32.mrb[0].mxu0
    %v114 = vadd.f32 %v58, %v113
    %v115 = vpop.f32.mrb[0].mxu0
    %v116 = vpop.f32.mrb[0].mxu0
    %v117 = vadd.f32 %v58, %v116
    %v118 = vpop.f32.mrb[0].mxu0
    %119 = vmatprep.mubr.bf16.mxu0 0
    %120 = vmatmul.mubr.bf16.gmra.mrb[0].mxu0 %v77
    %v121 = vpop.f32.mrb[0].mxu0
    %v122 = vadd.f32 %v58, %v121
    %v123 = vpop.f32.mrb[0].mxu0
    %v124 = vpop.f32.mrb[0].mxu0
    %v125 = vadd.f32 %v58, %v124
    %v126 = vpop.f32.mrb[0].mxu0
    %127 = vdwg.mxu0
    %v128 = vld [vmem:[%s2] sm:$0xf]
    %v129 = vld [vmem:[%s2 + $0x4] sm:$0xf]
    %v130 = vld [vmem:[%s2 + $0x8] sm:$0xf]
    %v131 = vld [vmem:[%s2 + $0xc] sm:$0xf]
    %v132 = vld [vmem:[%s4] sm:$0x1]
    %v134 = vlaneseq
    %v135 = vshrl.u32 %v134, 7
    %v136 = vsub.s32 0, %v135
    %v137 = vrot.slane %v132, %v136
    %v143 = vunpack.c.l.b16 %v128
    %v144 = vunpack.c.l.b16 %v129
    %v145 = vunpack.c.l.b16 %v130
    %v146 = vunpack.c.l.b16 %v131
    %v147 = vpack.c.b16 %v144, %v143
    %v148 = vpack.c.b16 %v146, %v145
    %151 = vmatprep.subr.bf16.mxu0 0
    %152 = vmatpush1.bf16.msra.mxu0 %v147
    %153 = vmatprep.subr.bf16.mxu0 0
    %154 = vmatpush1.bf16.msra.mxu0 %v148
    %155 = vmatprep.subr.bf16.mxu0 0
    %156 = vmatpush1.bf16.msra.mxu0 0
    %157 = vmatprep.subr.bf16.mxu0 0
    %158 = vmatpush1.bf16.msra.mxu0 0
    %159 = vmatprep.subr.bf16.mxu0 0
    %160 = vmatpush1.bf16.msra.mxu0 0
    %161 = vmatprep.subr.bf16.mxu0 0
    %162 = vmatpush1.bf16.msra.mxu0 0
    %163 = vmatprep.subr.bf16.mxu0 0
    %164 = vmatpush1.bf16.msra.mxu0 0
    %165 = vmatprep.subr.bf16.mxu0 0
    %166 = vmatpush1.bf16.msra.mxu0 0
    %167 = vmatprep.subr.bf16.mxu0 0
    %168 = vmatpush1.bf16.msra.mxu0 0
    %169 = vmatprep.subr.bf16.mxu0 0
    %170 = vmatpush1.bf16.msra.mxu0 0
    %171 = vmatprep.subr.bf16.mxu0 0
    %172 = vmatpush1.bf16.msra.mxu0 0
    %173 = vmatprep.subr.bf16.mxu0 0
    %174 = vmatpush1.bf16.msra.mxu0 0
    %175 = vmatprep.subr.bf16.mxu0 0
    %176 = vmatpush1.bf16.msra.mxu0 0
    %177 = vmatprep.subr.bf16.mxu0 0
    %178 = vmatpush1.bf16.msra.mxu0 0
    %179 = vmatprep.subr.bf16.mxu0 0
    %180 = vmatpush1.bf16.msra.mxu0 0
    %181 = vmatprep.subr.bf16.mxu0 0
    %182 = vmatpush1.bf16.msra.mxu0 0
    %183 = vmatprep.mubr.bf16.mxu0 0
    %184 = vmatmul.mubr.bf16.gmra.mrb[0].mxu0 %v74
    %v185 = vpop.f32.mrb[0].mxu0
    %v186 = vadd.f32 %v137, %v185
    %v187 = vpop.f32.mrb[0].mxu0
    %v188 = vpop.f32.mrb[0].mxu0
    %v189 = vadd.f32 %v137, %v188
    %v190 = vpop.f32.mrb[0].mxu0
    %191 = vmatprep.mubr.bf16.mxu0 0
    %192 = vmatmul.mubr.bf16.gmra.mrb[0].mxu0 %v77
    %v193 = vpop.f32.mrb[0].mxu0
    %v194 = vadd.f32 %v137, %v193
    %v195 = vpop.f32.mrb[0].mxu0
    %v196 = vpop.f32.mrb[0].mxu0
    %v197 = vadd.f32 %v137, %v196
    %v198 = vpop.f32.mrb[0].mxu0
    %199 = vdwg.mxu0
    %v200 = vmul.f32 %v114, 0.5
    %v201 = vmul.f32 %v117, 0.5
    %v202 = vmul.f32 %v122, 0.5
    %v203 = vmul.f32 %v125, 0.5
    %v204 = vtanh.pop %v200
    %v205 = vtanh.pop %v201
    %v206 = vtanh.pop %v202
    %v207 = vtanh.pop %v203
    %v208 = vsub.f32 1.0, %v204
    %v209 = vsub.f32 1.0, %v205
    %v210 = vsub.f32 1.0, %v206
    %v211 = vsub.f32 1.0, %v207
    %v212 = vmul.f32 %v208, 0.5
    %v213 = vmul.f32 %v209, 0.5
    %v214 = vmul.f32 %v210, 0.5
    %v215 = vmul.f32 %v211, 0.5
    %v216 = vtanh.pop %v186
    %v217 = vtanh.pop %v189
    %v218 = vtanh.pop %v194
    %v219 = vtanh.pop %v197
    %v220 = vmul.f32 %v212, %v216
    %v221 = vmul.f32 %v213, %v217
    %v222 = vmul.f32 %v214, %v218
    %v223 = vmul.f32 %v215, %v219
    %v224 = vpack.c.bf16 %v221, %v220
    %v225 = vpack.c.bf16 %v223, %v222
    %v226 = vld [vmem:[%s5] sm:$0xf]
    %v227 = vld [vmem:[%s5 + $0x4] sm:$0xf]
    %v228 = vld [vmem:[%s5 + $0x8] sm:$0xf]
    %v229 = vld [vmem:[%s5 + $0xc] sm:$0xf]
    %v234 = vunpack.c.l.b16 %v226
    %v235 = vunpack.c.l.b16 %v227
    %v236 = vunpack.c.l.b16 %v228
    %v237 = vunpack.c.l.b16 %v229
    %v238 = vpack.c.b16 %v235, %v234
    %v239 = vpack.c.b16 %v237, %v236
    %v243 = vsel %vm72, %v224, 0
    %v246 = vsel %vm72, %v225, 0
    %248 = vmatprep.subr.bf16.mxu0 0
    %249 = vmatpush1.bf16.msra.mxu0 %v238
    %250 = vmatprep.subr.bf16.mxu0 0
    %251 = vmatpush1.bf16.msra.mxu0 %v239
    %252 = vmatprep.subr.bf16.mxu0 0
    %253 = vmatpush1.bf16.msra.mxu0 0
    %254 = vmatprep.subr.bf16.mxu0 0
    %255 = vmatpush1.bf16.msra.mxu0 0
    %256 = vmatprep.subr.bf16.mxu0 0
    %257 = vmatpush1.bf16.msra.mxu0 0
    %258 = vmatprep.subr.bf16.mxu0 0
    %259 = vmatpush1.bf16.msra.mxu0 0
    %260 = vmatprep.subr.bf16.mxu0 0
    %261 = vmatpush1.bf16.msra.mxu0 0
    %262 = vmatprep.subr.bf16.mxu0 0
    %263 = vmatpush1.bf16.msra.mxu0 0
    %264 = vmatprep.subr.bf16.mxu0 0
    %265 = vmatpush1.bf16.msra.mxu0 0
    %266 = vmatprep.subr.bf16.mxu0 0
    %267 = vmatpush1.bf16.msra.mxu0 0
    %268 = vmatprep.subr.bf16.mxu0 0
    %269 = vmatpush1.bf16.msra.mxu0 0
    %270 = vmatprep.subr.bf16.mxu0 0
    %271 = vmatpush1.bf16.msra.mxu0 0
    %272 = vmatprep.subr.bf16.mxu0 0
    %273 = vmatpush1.bf16.msra.mxu0 0
    %274 = vmatprep.subr.bf16.mxu0 0
    %275 = vmatpush1.bf16.msra.mxu0 0
    %276 = vmatprep.subr.bf16.mxu0 0
    %277 = vmatpush1.bf16.msra.mxu0 0
    %278 = vmatprep.subr.bf16.mxu0 0
    %279 = vmatpush1.bf16.msra.mxu0 0
    %280 = vmatprep.mubr.bf16.mxu0 0
    %281 = vmatmul.mubr.bf16.gmra.mrb[0].mxu0 %v243
    %v282 = vpop.f32.mrb[0].mxu0
    %v283 = vadd.f32 0.0, %v282
    %v284 = vpop.f32.mrb[0].mxu0
    %v285 = vpop.f32.mrb[0].mxu0
    %v286 = vadd.f32 0.0, %v285
    %v287 = vpop.f32.mrb[0].mxu0
    %288 = vmatprep.mubr.bf16.mxu0 0
    %289 = vmatmul.mubr.bf16.gmra.mrb[0].mxu0 %v246
    %v290 = vpop.f32.mrb[0].mxu0
    %v291 = vadd.f32 0.0, %v290
    %v292 = vpop.f32.mrb[0].mxu0
    %v293 = vpop.f32.mrb[0].mxu0
    %v294 = vadd.f32 0.0, %v293
    %v295 = vpop.f32.mrb[0].mxu0
    %296 = vdwg.mxu0
    %v297 = vld [vmem:[%s5 + $0x10] sm:$0xf]
    %v298 = vld [vmem:[%s5 + $0x14] sm:$0xf]
    %v299 = vld [vmem:[%s5 + $0x18] sm:$0xf]
    %v300 = vld [vmem:[%s5 + $0x1c] sm:$0xf]
    %v305 = vunpack.c.l.b16 %v297
    %v306 = vunpack.c.l.b16 %v298
    %v307 = vunpack.c.l.b16 %v299
    %v308 = vunpack.c.l.b16 %v300
    %v309 = vpack.c.b16 %v306, %v305
    %v310 = vpack.c.b16 %v308, %v307
    %313 = vmatprep.subr.bf16.mxu0 0
    %314 = vmatpush1.bf16.msra.mxu0 %v309
    %315 = vmatprep.subr.bf16.mxu0 0
    %316 = vmatpush1.bf16.msra.mxu0 %v310
    %317 = vmatprep.subr.bf16.mxu0 0
    %318 = vmatpush1.bf16.msra.mxu0 0
    %319 = vmatprep.subr.bf16.mxu0 0
    %320 = vmatpush1.bf16.msra.mxu0 0
    %321 = vmatprep.subr.bf16.mxu0 0
    %322 = vmatpush1.bf16.msra.mxu0 0
    %323 = vmatprep.subr.bf16.mxu0 0
    %324 = vmatpush1.bf16.msra.mxu0 0
    %325 = vmatprep.subr.bf16.mxu0 0
    %326 = vmatpush1.bf16.msra.mxu0 0
    %327 = vmatprep.subr.bf16.mxu0 0
    %328 = vmatpush1.bf16.msra.mxu0 0
    %329 = vmatprep.subr.bf16.mxu0 0
    %330 = vmatpush1.bf16.msra.mxu0 0
    %331 = vmatprep.subr.bf16.mxu0 0
    %332 = vmatpush1.bf16.msra.mxu0 0
    %333 = vmatprep.subr.bf16.mxu0 0
    %334 = vmatpush1.bf16.msra.mxu0 0
    %335 = vmatprep.subr.bf16.mxu0 0
    %336 = vmatpush1.bf16.msra.mxu0 0
    %337 = vmatprep.subr.bf16.mxu0 0
    %338 = vmatpush1.bf16.msra.mxu0 0
    %339 = vmatprep.subr.bf16.mxu0 0
    %340 = vmatpush1.bf16.msra.mxu0 0
    %341 = vmatprep.subr.bf16.mxu0 0
    %342 = vmatpush1.bf16.msra.mxu0 0
    %343 = vmatprep.subr.bf16.mxu0 0
    %344 = vmatpush1.bf16.msra.mxu0 0
    %345 = vmatprep.mubr.bf16.mxu0 0
    %346 = vmatmul.mubr.bf16.gmra.mrb[0].mxu0 %v243
    %v347 = vpop.f32.mrb[0].mxu0
    %v348 = vadd.f32 0.0, %v347
    %v349 = vpop.f32.mrb[0].mxu0
    %v350 = vpop.f32.mrb[0].mxu0
    %v351 = vadd.f32 0.0, %v350
    %v352 = vpop.f32.mrb[0].mxu0
    %353 = vmatprep.mubr.bf16.mxu0 0
    %354 = vmatmul.mubr.bf16.gmra.mrb[0].mxu0 %v246
    %v355 = vpop.f32.mrb[0].mxu0
    %v356 = vadd.f32 0.0, %v355
    %v357 = vpop.f32.mrb[0].mxu0
    %v358 = vpop.f32.mrb[0].mxu0
    %v359 = vadd.f32 0.0, %v358
    %v360 = vpop.f32.mrb[0].mxu0
    %361 = vdwg.mxu0
    %v362 = vld [vmem:[%s5 + $0x20] sm:$0xf]
    %v363 = vld [vmem:[%s5 + $0x24] sm:$0xf]
    %v364 = vld [vmem:[%s5 + $0x28] sm:$0xf]
    %v365 = vld [vmem:[%s5 + $0x2c] sm:$0xf]
    %v370 = vunpack.c.l.b16 %v362
    %v371 = vunpack.c.l.b16 %v363
    %v372 = vunpack.c.l.b16 %v364
    %v373 = vunpack.c.l.b16 %v365
    %v374 = vpack.c.b16 %v371, %v370
    %v375 = vpack.c.b16 %v373, %v372
    %378 = vmatprep.subr.bf16.mxu0 0
    %379 = vmatpush1.bf16.msra.mxu0 %v374
    %380 = vmatprep.subr.bf16.mxu0 0
    %381 = vmatpush1.bf16.msra.mxu0 %v375
    %382 = vmatprep.subr.bf16.mxu0 0
    %383 = vmatpush1.bf16.msra.mxu0 0
    %384 = vmatprep.subr.bf16.mxu0 0
    %385 = vmatpush1.bf16.msra.mxu0 0
    %386 = vmatprep.subr.bf16.mxu0 0
    %387 = vmatpush1.bf16.msra.mxu0 0
    %388 = vmatprep.subr.bf16.mxu0 0
    %389 = vmatpush1.bf16.msra.mxu0 0
    %390 = vmatprep.subr.bf16.mxu0 0
    %391 = vmatpush1.bf16.msra.mxu0 0
    %392 = vmatprep.subr.bf16.mxu0 0
    %393 = vmatpush1.bf16.msra.mxu0 0
    %394 = vmatprep.subr.bf16.mxu0 0
    %395 = vmatpush1.bf16.msra.mxu0 0
    %396 = vmatprep.subr.bf16.mxu0 0
    %397 = vmatpush1.bf16.msra.mxu0 0
    %398 = vmatprep.subr.bf16.mxu0 0
    %399 = vmatpush1.bf16.msra.mxu0 0
    %400 = vmatprep.subr.bf16.mxu0 0
    %401 = vmatpush1.bf16.msra.mxu0 0
    %402 = vmatprep.subr.bf16.mxu0 0
    %403 = vmatpush1.bf16.msra.mxu0 0
    %404 = vmatprep.subr.bf16.mxu0 0
    %405 = vmatpush1.bf16.msra.mxu0 0
    %406 = vmatprep.subr.bf16.mxu0 0
    %407 = vmatpush1.bf16.msra.mxu0 0
    %408 = vmatprep.subr.bf16.mxu0 0
    %409 = vmatpush1.bf16.msra.mxu0 0
    %410 = vmatprep.mubr.bf16.mxu0 0
    %411 = vmatmul.mubr.bf16.gmra.mrb[0].mxu0 %v243
    %v412 = vpop.f32.mrb[0].mxu0
    %v413 = vadd.f32 0.0, %v412
    %v414 = vpop.f32.mrb[0].mxu0
    %v415 = vpop.f32.mrb[0].mxu0
    %v416 = vadd.f32 0.0, %v415
    %v417 = vpop.f32.mrb[0].mxu0
    %418 = vmatprep.mubr.bf16.mxu0 0
    %419 = vmatmul.mubr.bf16.gmra.mrb[0].mxu0 %v246
    %v420 = vpop.f32.mrb[0].mxu0
    %v421 = vadd.f32 0.0, %v420
    %v422 = vpop.f32.mrb[0].mxu0
    %v423 = vpop.f32.mrb[0].mxu0
    %v424 = vadd.f32 0.0, %v423
    %v425 = vpop.f32.mrb[0].mxu0
    %426 = vdwg.mxu0
    %v427 = vld [vmem:[%s5 + $0x30] sm:$0xf]
    %v428 = vld [vmem:[%s5 + $0x34] sm:$0xf]
    %v429 = vld [vmem:[%s5 + $0x38] sm:$0xf]
    %v430 = vld [vmem:[%s5 + $0x3c] sm:$0xf]
    %v435 = vunpack.c.l.b16 %v427
    %v436 = vunpack.c.l.b16 %v428
    %v437 = vunpack.c.l.b16 %v429
    %v438 = vunpack.c.l.b16 %v430
    %v439 = vpack.c.b16 %v436, %v435
    %v440 = vpack.c.b16 %v438, %v437
    %443 = vmatprep.subr.bf16.mxu0 0
    %444 = vmatpush1.bf16.msra.mxu0 %v439
    %445 = vmatprep.subr.bf16.mxu0 0
    %446 = vmatpush1.bf16.msra.mxu0 %v440
    %447 = vmatprep.subr.bf16.mxu0 0
    %448 = vmatpush1.bf16.msra.mxu0 0
    %449 = vmatprep.subr.bf16.mxu0 0
    %450 = vmatpush1.bf16.msra.mxu0 0
    %451 = vmatprep.subr.bf16.mxu0 0
    %452 = vmatpush1.bf16.msra.mxu0 0
    %453 = vmatprep.subr.bf16.mxu0 0
    %454 = vmatpush1.bf16.msra.mxu0 0
    %455 = vmatprep.subr.bf16.mxu0 0
    %456 = vmatpush1.bf16.msra.mxu0 0
    %457 = vmatprep.subr.bf16.mxu0 0
    %458 = vmatpush1.bf16.msra.mxu0 0
    %459 = vmatprep.subr.bf16.mxu0 0
    %460 = vmatpush1.bf16.msra.mxu0 0
    %461 = vmatprep.subr.bf16.mxu0 0
    %462 = vmatpush1.bf16.msra.mxu0 0
    %463 = vmatprep.subr.bf16.mxu0 0
    %464 = vmatpush1.bf16.msra.mxu0 0
    %465 = vmatprep.subr.bf16.mxu0 0
    %466 = vmatpush1.bf16.msra.mxu0 0
    %467 = vmatprep.subr.bf16.mxu0 0
    %468 = vmatpush1.bf16.msra.mxu0 0
    %469 = vmatprep.subr.bf16.mxu0 0
    %470 = vmatpush1.bf16.msra.mxu0 0
    %471 = vmatprep.subr.bf16.mxu0 0
    %472 = vmatpush1.bf16.msra.mxu0 0
    %473 = vmatprep.subr.bf16.mxu0 0
    %474 = vmatpush1.bf16.msra.mxu0 0
    %475 = vmatprep.mubr.bf16.mxu0 0
    %476 = vmatmul.mubr.bf16.gmra.mrb[0].mxu0 %v243
    %v477 = vpop.f32.mrb[0].mxu0
    %v478 = vadd.f32 0.0, %v477
    %v479 = vpop.f32.mrb[0].mxu0
    %v480 = vpop.f32.mrb[0].mxu0
    %v481 = vadd.f32 0.0, %v480
    %v482 = vpop.f32.mrb[0].mxu0
    %483 = vmatprep.mubr.bf16.mxu0 0
    %484 = vmatmul.mubr.bf16.gmra.mrb[0].mxu0 %v246
    %v485 = vpop.f32.mrb[0].mxu0
    %v486 = vadd.f32 0.0, %v485
    %v487 = vpop.f32.mrb[0].mxu0
    %v488 = vpop.f32.mrb[0].mxu0
    %v489 = vadd.f32 0.0, %v488
    %v490 = vpop.f32.mrb[0].mxu0
    %491 = vdwg.mxu0
    %v492 = vld [vmem:[%s5 + $0x40] sm:$0xf]
    %v493 = vld [vmem:[%s5 + $0x44] sm:$0xf]
    %v494 = vld [vmem:[%s5 + $0x48] sm:$0xf]
    %v495 = vld [vmem:[%s5 + $0x4c] sm:$0xf]
    %v500 = vunpack.c.l.b16 %v492
    %v501 = vunpack.c.l.b16 %v493
    %v502 = vunpack.c.l.b16 %v494
    %v503 = vunpack.c.l.b16 %v495
    %v504 = vpack.c.b16 %v501, %v500
    %v505 = vpack.c.b16 %v503, %v502
    %508 = vmatprep.subr.bf16.mxu0 0
    %509 = vmatpush1.bf16.msra.mxu0 %v504
    %510 = vmatprep.subr.bf16.mxu0 0
    %511 = vmatpush1.bf16.msra.mxu0 %v505
    %512 = vmatprep.subr.bf16.mxu0 0
    %513 = vmatpush1.bf16.msra.mxu0 0
    %514 = vmatprep.subr.bf16.mxu0 0
    %515 = vmatpush1.bf16.msra.mxu0 0
    %516 = vmatprep.subr.bf16.mxu0 0
    %517 = vmatpush1.bf16.msra.mxu0 0
    %518 = vmatprep.subr.bf16.mxu0 0
    %519 = vmatpush1.bf16.msra.mxu0 0
    %520 = vmatprep.subr.bf16.mxu0 0
    %521 = vmatpush1.bf16.msra.mxu0 0
    %522 = vmatprep.subr.bf16.mxu0 0
    %523 = vmatpush1.bf16.msra.mxu0 0
    %524 = vmatprep.subr.bf16.mxu0 0
    %525 = vmatpush1.bf16.msra.mxu0 0
    %526 = vmatprep.subr.bf16.mxu0 0
    %527 = vmatpush1.bf16.msra.mxu0 0
    %528 = vmatprep.subr.bf16.mxu0 0
    %529 = vmatpush1.bf16.msra.mxu0 0
    %530 = vmatprep.subr.bf16.mxu0 0
    %531 = vmatpush1.bf16.msra.mxu0 0
    %532 = vmatprep.subr.bf16.mxu0 0
    %533 = vmatpush1.bf16.msra.mxu0 0
    %534 = vmatprep.subr.bf16.mxu0 0
    %535 = vmatpush1.bf16.msra.mxu0 0
    %536 = vmatprep.subr.bf16.mxu0 0
    %537 = vmatpush1.bf16.msra.mxu0 0
    %538 = vmatprep.subr.bf16.mxu0 0
    %539 = vmatpush1.bf16.msra.mxu0 0
    %540 = vmatprep.mubr.bf16.mxu0 0
    %541 = vmatmul.mubr.bf16.gmra.mrb[0].mxu0 %v243
    %v542 = vpop.f32.mrb[0].mxu0
    %v543 = vadd.f32 0.0, %v542
    %v544 = vpop.f32.mrb[0].mxu0
    %v545 = vpop.f32.mrb[0].mxu0
    %v546 = vadd.f32 0.0, %v545
    %v547 = vpop.f32.mrb[0].mxu0
    %548 = vmatprep.mubr.bf16.mxu0 0
    %549 = vmatmul.mubr.bf16.gmra.mrb[0].mxu0 %v246
    %v550 = vpop.f32.mrb[0].mxu0
    %v551 = vadd.f32 0.0, %v550
    %v552 = vpop.f32.mrb[0].mxu0
    %v553 = vpop.f32.mrb[0].mxu0
    %v554 = vadd.f32 0.0, %v553
    %v555 = vpop.f32.mrb[0].mxu0
    %556 = vdwg.mxu0
    %v557 = vld [vmem:[%s5 + $0x50] sm:$0xf]
    %v558 = vld [vmem:[%s5 + $0x54] sm:$0xf]
    %v559 = vld [vmem:[%s5 + $0x58] sm:$0xf]
    %v560 = vld [vmem:[%s5 + $0x5c] sm:$0xf]
    %v565 = vunpack.c.l.b16 %v557
    %v566 = vunpack.c.l.b16 %v558
    %v567 = vunpack.c.l.b16 %v559
    %v568 = vunpack.c.l.b16 %v560
    %v569 = vpack.c.b16 %v566, %v565
    %v570 = vpack.c.b16 %v568, %v567
    %573 = vmatprep.subr.bf16.mxu0 0
    %574 = vmatpush1.bf16.msra.mxu0 %v569
    %575 = vmatprep.subr.bf16.mxu0 0
    %576 = vmatpush1.bf16.msra.mxu0 %v570
    %577 = vmatprep.subr.bf16.mxu0 0
    %578 = vmatpush1.bf16.msra.mxu0 0
    %579 = vmatprep.subr.bf16.mxu0 0
    %580 = vmatpush1.bf16.msra.mxu0 0
    %581 = vmatprep.subr.bf16.mxu0 0
    %582 = vmatpush1.bf16.msra.mxu0 0
    %583 = vmatprep.subr.bf16.mxu0 0
    %584 = vmatpush1.bf16.msra.mxu0 0
    %585 = vmatprep.subr.bf16.mxu0 0
    %586 = vmatpush1.bf16.msra.mxu0 0
    %587 = vmatprep.subr.bf16.mxu0 0
    %588 = vmatpush1.bf16.msra.mxu0 0
    %589 = vmatprep.subr.bf16.mxu0 0
    %590 = vmatpush1.bf16.msra.mxu0 0
    %591 = vmatprep.subr.bf16.mxu0 0
    %592 = vmatpush1.bf16.msra.mxu0 0
    %593 = vmatprep.subr.bf16.mxu0 0
    %594 = vmatpush1.bf16.msra.mxu0 0
    %595 = vmatprep.subr.bf16.mxu0 0
    %596 = vmatpush1.bf16.msra.mxu0 0
    %597 = vmatprep.subr.bf16.mxu0 0
    %598 = vmatpush1.bf16.msra.mxu0 0
    %599 = vmatprep.subr.bf16.mxu0 0
    %600 = vmatpush1.bf16.msra.mxu0 0
    %601 = vmatprep.subr.bf16.mxu0 0
    %602 = vmatpush1.bf16.msra.mxu0 0
    %603 = vmatprep.subr.bf16.mxu0 0
    %604 = vmatpush1.bf16.msra.mxu0 0
    %605 = vmatprep.mubr.bf16.mxu0 0
    %606 = vmatmul.mubr.bf16.gmra.mrb[0].mxu0 %v243
    %v607 = vpop.f32.mrb[0].mxu0
    %v608 = vadd.f32 0.0, %v607
    %v609 = vpop.f32.mrb[0].mxu0
    %v610 = vpop.f32.mrb[0].mxu0
    %v611 = vadd.f32 0.0, %v610
    %v612 = vpop.f32.mrb[0].mxu0
    %613 = vmatprep.mubr.bf16.mxu0 0
    %614 = vmatmul.mubr.bf16.gmra.mrb[0].mxu0 %v246
    %v615 = vpop.f32.mrb[0].mxu0
    %v616 = vadd.f32 0.0, %v615
    %v617 = vpop.f32.mrb[0].mxu0
    %v618 = vpop.f32.mrb[0].mxu0
    %v619 = vadd.f32 0.0, %v618
    %v620 = vpop.f32.mrb[0].mxu0
    %621 = vdwg.mxu0
    %v622 = vld [vmem:[%s5 + $0x60] sm:$0xf]
    %v623 = vld [vmem:[%s5 + $0x64] sm:$0xf]
    %v624 = vld [vmem:[%s5 + $0x68] sm:$0xf]
    %v625 = vld [vmem:[%s5 + $0x6c] sm:$0xf]
    %v630 = vunpack.c.l.b16 %v622
    %v631 = vunpack.c.l.b16 %v623
    %v632 = vunpack.c.l.b16 %v624
    %v633 = vunpack.c.l.b16 %v625
    %v634 = vpack.c.b16 %v631, %v630
    %v635 = vpack.c.b16 %v633, %v632
    %638 = vmatprep.subr.bf16.mxu0 0
    %639 = vmatpush1.bf16.msra.mxu0 %v634
    %640 = vmatprep.subr.bf16.mxu0 0
    %641 = vmatpush1.bf16.msra.mxu0 %v635
    %642 = vmatprep.subr.bf16.mxu0 0
    %643 = vmatpush1.bf16.msra.mxu0 0
    %644 = vmatprep.subr.bf16.mxu0 0
    %645 = vmatpush1.bf16.msra.mxu0 0
    %646 = vmatprep.subr.bf16.mxu0 0
    %647 = vmatpush1.bf16.msra.mxu0 0
    %648 = vmatprep.subr.bf16.mxu0 0
    %649 = vmatpush1.bf16.msra.mxu0 0
    %650 = vmatprep.subr.bf16.mxu0 0
    %651 = vmatpush1.bf16.msra.mxu0 0
    %652 = vmatprep.subr.bf16.mxu0 0
    %653 = vmatpush1.bf16.msra.mxu0 0
    %654 = vmatprep.subr.bf16.mxu0 0
    %655 = vmatpush1.bf16.msra.mxu0 0
    %656 = vmatprep.subr.bf16.mxu0 0
    %657 = vmatpush1.bf16.msra.mxu0 0
    %658 = vmatprep.subr.bf16.mxu0 0
    %659 = vmatpush1.bf16.msra.mxu0 0
    %660 = vmatprep.subr.bf16.mxu0 0
    %661 = vmatpush1.bf16.msra.mxu0 0
    %662 = vmatprep.subr.bf16.mxu0 0
    %663 = vmatpush1.bf16.msra.mxu0 0
    %664 = vmatprep.subr.bf16.mxu0 0
    %665 = vmatpush1.bf16.msra.mxu0 0
    %666 = vmatprep.subr.bf16.mxu0 0
    %667 = vmatpush1.bf16.msra.mxu0 0
    %668 = vmatprep.subr.bf16.mxu0 0
    %669 = vmatpush1.bf16.msra.mxu0 0
    %670 = vmatprep.mubr.bf16.mxu0 0
    %671 = vmatmul.mubr.bf16.gmra.mrb[0].mxu0 %v243
    %v672 = vpop.f32.mrb[0].mxu0
    %v673 = vadd.f32 0.0, %v672
    %v674 = vpop.f32.mrb[0].mxu0
    %v675 = vpop.f32.mrb[0].mxu0
    %v676 = vadd.f32 0.0, %v675
    %v677 = vpop.f32.mrb[0].mxu0
    %678 = vmatprep.mubr.bf16.mxu0 0
    %679 = vmatmul.mubr.bf16.gmra.mrb[0].mxu0 %v246
    %v680 = vpop.f32.mrb[0].mxu0
    %v681 = vadd.f32 0.0, %v680
    %v682 = vpop.f32.mrb[0].mxu0
    %v683 = vpop.f32.mrb[0].mxu0
    %v684 = vadd.f32 0.0, %v683
    %v685 = vpop.f32.mrb[0].mxu0
    %686 = vdwg.mxu0
    %v687 = vld [vmem:[%s5 + $0x70] sm:$0xf]
    %v688 = vld [vmem:[%s5 + $0x74] sm:$0xf]
    %v689 = vld [vmem:[%s5 + $0x78] sm:$0xf]
    %v690 = vld [vmem:[%s5 + $0x7c] sm:$0xf]
    %v695 = vunpack.c.l.b16 %v687
    %v696 = vunpack.c.l.b16 %v688
    %v697 = vunpack.c.l.b16 %v689
    %v698 = vunpack.c.l.b16 %v690
    %v699 = vpack.c.b16 %v696, %v695
    %v700 = vpack.c.b16 %v698, %v697
    %703 = vmatprep.subr.bf16.mxu0 0
    %704 = vmatpush1.bf16.msra.mxu0 %v699
    %705 = vmatprep.subr.bf16.mxu0 0
    %706 = vmatpush1.bf16.msra.mxu0 %v700
    %707 = vmatprep.subr.bf16.mxu0 0
    %708 = vmatpush1.bf16.msra.mxu0 0
    %709 = vmatprep.subr.bf16.mxu0 0
    %710 = vmatpush1.bf16.msra.mxu0 0
    %711 = vmatprep.subr.bf16.mxu0 0
    %712 = vmatpush1.bf16.msra.mxu0 0
    %713 = vmatprep.subr.bf16.mxu0 0
    %714 = vmatpush1.bf16.msra.mxu0 0
    %715 = vmatprep.subr.bf16.mxu0 0
    %716 = vmatpush1.bf16.msra.mxu0 0
    %717 = vmatprep.subr.bf16.mxu0 0
    %718 = vmatpush1.bf16.msra.mxu0 0
    %719 = vmatprep.subr.bf16.mxu0 0
    %720 = vmatpush1.bf16.msra.mxu0 0
    %721 = vmatprep.subr.bf16.mxu0 0
    %722 = vmatpush1.bf16.msra.mxu0 0
    %723 = vmatprep.subr.bf16.mxu0 0
    %724 = vmatpush1.bf16.msra.mxu0 0
    %725 = vmatprep.subr.bf16.mxu0 0
    %726 = vmatpush1.bf16.msra.mxu0 0
    %727 = vmatprep.subr.bf16.mxu0 0
    %728 = vmatpush1.bf16.msra.mxu0 0
    %729 = vmatprep.subr.bf16.mxu0 0
    %730 = vmatpush1.bf16.msra.mxu0 0
    %731 = vmatprep.subr.bf16.mxu0 0
    %732 = vmatpush1.bf16.msra.mxu0 0
    %733 = vmatprep.subr.bf16.mxu0 0
    %734 = vmatpush1.bf16.msra.mxu0 0
    %735 = vmatprep.mubr.bf16.mxu0 0
    %736 = vmatmul.mubr.bf16.gmra.mrb[0].mxu0 %v243
    %v737 = vpop.f32.mrb[0].mxu0
    %v738 = vadd.f32 0.0, %v737
    %v739 = vpop.f32.mrb[0].mxu0
    %v740 = vpop.f32.mrb[0].mxu0
    %v741 = vadd.f32 0.0, %v740
    %v742 = vpop.f32.mrb[0].mxu0
    %743 = vmatprep.mubr.bf16.mxu0 0
    %744 = vmatmul.mubr.bf16.gmra.mrb[0].mxu0 %v246
    %v745 = vpop.f32.mrb[0].mxu0
    %v746 = vadd.f32 0.0, %v745
    %v747 = vpop.f32.mrb[0].mxu0
    %v748 = vpop.f32.mrb[0].mxu0
    %v749 = vadd.f32 0.0, %v748
    %v750 = vpop.f32.mrb[0].mxu0
    %751 = vdwg.mxu0
    %v752 = vld [vmem:[%s5 + $0x80] sm:$0xf]
    %v753 = vld [vmem:[%s5 + $0x84] sm:$0xf]
    %v754 = vld [vmem:[%s5 + $0x88] sm:$0xf]
    %v755 = vld [vmem:[%s5 + $0x8c] sm:$0xf]
    %v760 = vunpack.c.l.b16 %v752
    %v761 = vunpack.c.l.b16 %v753
    %v762 = vunpack.c.l.b16 %v754
    %v763 = vunpack.c.l.b16 %v755
    %v764 = vpack.c.b16 %v761, %v760
    %v765 = vpack.c.b16 %v763, %v762
    %768 = vmatprep.subr.bf16.mxu0 0
    %769 = vmatpush1.bf16.msra.mxu0 %v764
    %770 = vmatprep.subr.bf16.mxu0 0
    %771 = vmatpush1.bf16.msra.mxu0 %v765
    %772 = vmatprep.subr.bf16.mxu0 0
    %773 = vmatpush1.bf16.msra.mxu0 0
    %774 = vmatprep.subr.bf16.mxu0 0
    %775 = vmatpush1.bf16.msra.mxu0 0
    %776 = vmatprep.subr.bf16.mxu0 0
    %777 = vmatpush1.bf16.msra.mxu0 0
    %778 = vmatprep.subr.bf16.mxu0 0
    %779 = vmatpush1.bf16.msra.mxu0 0
    %780 = vmatprep.subr.bf16.mxu0 0
    %781 = vmatpush1.bf16.msra.mxu0 0
    %782 = vmatprep.subr.bf16.mxu0 0
    %783 = vmatpush1.bf16.msra.mxu0 0
    %784 = vmatprep.subr.bf16.mxu0 0
    %785 = vmatpush1.bf16.msra.mxu0 0
    %786 = vmatprep.subr.bf16.mxu0 0
    %787 = vmatpush1.bf16.msra.mxu0 0
    %788 = vmatprep.subr.bf16.mxu0 0
    %789 = vmatpush1.bf16.msra.mxu0 0
    %790 = vmatprep.subr.bf16.mxu0 0
    %791 = vmatpush1.bf16.msra.mxu0 0
    %792 = vmatprep.subr.bf16.mxu0 0
    %793 = vmatpush1.bf16.msra.mxu0 0
    %794 = vmatprep.subr.bf16.mxu0 0
    %795 = vmatpush1.bf16.msra.mxu0 0
    %796 = vmatprep.subr.bf16.mxu0 0
    %797 = vmatpush1.bf16.msra.mxu0 0
    %798 = vmatprep.subr.bf16.mxu0 0
    %799 = vmatpush1.bf16.msra.mxu0 0
    %800 = vmatprep.mubr.bf16.mxu0 0
    %801 = vmatmul.mubr.bf16.gmra.mrb[0].mxu0 %v243
    %v802 = vpop.f32.mrb[0].mxu0
    %v803 = vadd.f32 0.0, %v802
    %v804 = vpop.f32.mrb[0].mxu0
    %v805 = vpop.f32.mrb[0].mxu0
    %v806 = vadd.f32 0.0, %v805
    %v807 = vpop.f32.mrb[0].mxu0
    %808 = vmatprep.mubr.bf16.mxu0 0
    %809 = vmatmul.mubr.bf16.gmra.mrb[0].mxu0 %v246
    %v810 = vpop.f32.mrb[0].mxu0
    %v811 = vadd.f32 0.0, %v810
    %v812 = vpop.f32.mrb[0].mxu0
    %v813 = vpop.f32.mrb[0].mxu0
    %v814 = vadd.f32 0.0, %v813
    %v815 = vpop.f32.mrb[0].mxu0
    %816 = vdwg.mxu0
    %v817 = vpack.c.bf16 %v286, %v283
    %v818 = vpack.c.bf16 %v294, %v291
    %v819 = vpack.c.bf16 %v351, %v348
    %v820 = vpack.c.bf16 %v359, %v356
    %v821 = vpack.c.bf16 %v416, %v413
    %v822 = vpack.c.bf16 %v424, %v421
    %v823 = vpack.c.bf16 %v481, %v478
    %v824 = vpack.c.bf16 %v489, %v486
    %v825 = vpack.c.bf16 %v546, %v543
    %v826 = vpack.c.bf16 %v554, %v551
    %v827 = vpack.c.bf16 %v611, %v608
    %v828 = vpack.c.bf16 %v619, %v616
    %v829 = vpack.c.bf16 %v676, %v673
    %v830 = vpack.c.bf16 %v684, %v681
    %v831 = vpack.c.bf16 %v741, %v738
    %v832 = vpack.c.bf16 %v749, %v746
    %v833 = vpack.c.bf16 %v806, %v803
    %v834 = vpack.c.bf16 %v814, %v811
    %v835 = vld [vmem:[%s8] sm:$0xff]
    %v836 = vld [vmem:[%s8 + $0x8] sm:$0xf]
    %v837 = vld [vmem:[%s8 + $0xc] sm:$0xff]
    %v838 = vld [vmem:[%s8 + $0x14] sm:$0xf]
    %v839 = vld [vmem:[%s8 + $0x18] sm:$0xff]
    %v840 = vld [vmem:[%s8 + $0x20] sm:$0xf]
    %v841 = vld [vmem:[%s8 + $0x24] sm:$0xff]
    %v842 = vld [vmem:[%s8 + $0x2c] sm:$0xf]
    %v843 = vld [vmem:[%s8 + $0x30] sm:$0xff]
    %v844 = vld [vmem:[%s8 + $0x38] sm:$0xf]
    %v845 = vld [vmem:[%s8 + $0x3c] sm:$0xff]
    %v846 = vld [vmem:[%s8 + $0x44] sm:$0xf]
    %v847 = vld [vmem:[%s8 + $0x48] sm:$0xff]
    %v848 = vld [vmem:[%s8 + $0x50] sm:$0xf]
    %v849 = vld [vmem:[%s8 + $0x54] sm:$0xff]
    %v850 = vld [vmem:[%s8 + $0x5c] sm:$0xf]
    %v851 = vld [vmem:[%s8 + $0x60] sm:$0xff]
    %v852 = vld [vmem:[%s8 + $0x68] sm:$0xf]
    %v853 = vld [vmem:[%s8 + $0x6c] sm:$0xff]
    %v854 = vld [vmem:[%s8 + $0x74] sm:$0xf]
    %v855 = vld [vmem:[%s8 + $0x78] sm:$0xff]
    %v856 = vld [vmem:[%s8 + $0x80] sm:$0xf]
    %v857 = vld [vmem:[%s8 + $0x84] sm:$0xff]
    %v858 = vld [vmem:[%s8 + $0x8c] sm:$0xf]
    %v859 = vld [vmem:[%s8 + $0x90] sm:$0xff]
    %v860 = vld [vmem:[%s8 + $0x98] sm:$0xf]
    %v861 = vld [vmem:[%s9] sm:$0xff]
    %v862 = vld [vmem:[%s9 + $0x8] sm:$0xff]
    %v863 = vld [vmem:[%s9 + $0x10] sm:$0xff]
    %v864 = vld [vmem:[%s9 + $0x18] sm:$0xff]
    %v865 = vld [vmem:[%s9 + $0x20] sm:$0xff]
    %v866 = vld [vmem:[%s9 + $0x28] sm:$0xff]
    %v867 = vld [vmem:[%s9 + $0x30] sm:$0xff]
    %v868 = vld [vmem:[%s9 + $0x38] sm:$0xff]
    %v869 = vld [vmem:[%s9 + $0x40] sm:$0xff]
    %v870 = vld [vmem:[%s9 + $0x48] sm:$0xff]
    %v871 = vld [vmem:[%s9 + $0x50] sm:$0xff]
    %v872 = vld [vmem:[%s9 + $0x58] sm:$0xff]
    %v873 = vld [vmem:[%s9 + $0x60] sm:$0xff]
    %v900 = vunpack.c.l.b16 %v835
    %v901 = vunpack.c.h.b16 %v835
    %v902 = vunpack.c.l.b16 %v836
    %v903 = vunpack.c.l.b16 %v837
    %v904 = vunpack.c.h.b16 %v837
    %v905 = vunpack.c.l.b16 %v838
    %v906 = vunpack.c.l.b16 %v839
    %v907 = vunpack.c.h.b16 %v839
    %v908 = vunpack.c.l.b16 %v840
    %v909 = vunpack.c.l.b16 %v841
    %v910 = vunpack.c.h.b16 %v841
    %v911 = vunpack.c.l.b16 %v842
    %v912 = vunpack.c.l.b16 %v843
    %v913 = vunpack.c.h.b16 %v843
    %v914 = vunpack.c.l.b16 %v844
    %v915 = vunpack.c.l.b16 %v845
    %v916 = vunpack.c.h.b16 %v845
    %v917 = vunpack.c.l.b16 %v846
    %v918 = vunpack.c.l.b16 %v847
    %v919 = vunpack.c.h.b16 %v847
    %v920 = vunpack.c.l.b16 %v848
    %v921 = vunpack.c.l.b16 %v849
    %v922 = vunpack.c.h.b16 %v849
    %v923 = vunpack.c.l.b16 %v850
    %v924 = vunpack.c.l.b16 %v851
    %v925 = vunpack.c.h.b16 %v851
    %v926 = vunpack.c.l.b16 %v852
    %v927 = vunpack.c.l.b16 %v853
    %v928 = vunpack.c.h.b16 %v853
    %v929 = vunpack.c.l.b16 %v854
    %v930 = vunpack.c.l.b16 %v855
    %v931 = vunpack.c.h.b16 %v855
    %v932 = vunpack.c.l.b16 %v856
    %v933 = vunpack.c.l.b16 %v857
    %v934 = vunpack.c.h.b16 %v857
    %v935 = vunpack.c.l.b16 %v858
    %v936 = vunpack.c.l.b16 %v859
    %v937 = vunpack.c.h.b16 %v859
    %v938 = vunpack.c.l.b16 %v860
    %v939 = vpack.c.b16 %v903, %v900
    %v940 = vpack.c.b16 %v904, %v901
    %v941 = vpack.c.b16 %v905, %v902
    %v942 = vpack.c.b16 %v909, %v906
    %v943 = vpack.c.b16 %v910, %v907
    %v944 = vpack.c.b16 %v911, %v908
    %v945 = vpack.c.b16 %v915, %v912
    %v946 = vpack.c.b16 %v916, %v913
    %v947 = vpack.c.b16 %v917, %v914
    %v948 = vpack.c.b16 %v921, %v918
    %v949 = vpack.c.b16 %v922, %v919
    %v950 = vpack.c.b16 %v923, %v920
    %v951 = vpack.c.b16 %v927, %v924
    %v952 = vpack.c.b16 %v928, %v925
    %v953 = vpack.c.b16 %v929, %v926
    %v954 = vpack.c.b16 %v933, %v930
    %v955 = vpack.c.b16 %v934, %v931
    %v956 = vpack.c.b16 %v935, %v932
    %v957 = vpack.c.b16 %v936, %v936
    %v958 = vpack.c.b16 %v937, %v937
    %v959 = vpack.c.b16 %v938, %v938
    %v975 = vsel %vm72, %v941, 0
    %v978 = vsel %vm72, %v944, 0
    %v981 = vsel %vm72, %v947, 0
    %v984 = vsel %vm72, %v950, 0
    %v987 = vsel %vm72, %v953, 0
    %v990 = vsel %vm72, %v956, 0
    %v993 = vsel %vm72, %v959, 0
    %995 = vmatprep.subr.bf16.mxu0 0
    %996 = vmatpush1.bf16.msra.mxu0 %v817
    %997 = vmatprep.subr.bf16.mxu0 0
    %998 = vmatpush1.bf16.msra.mxu0 %v818
    %999 = vmatprep.subr.bf16.mxu0 0
    %1000 = vmatpush1.bf16.msra.mxu0 %v819
    %1001 = vmatprep.subr.bf16.mxu0 0
    %1002 = vmatpush1.bf16.msra.mxu0 %v820
    %1003 = vmatprep.subr.bf16.mxu0 0
    %1004 = vmatpush1.bf16.msra.mxu0 %v821
    %1005 = vmatprep.subr.bf16.mxu0 0
    %1006 = vmatpush1.bf16.msra.mxu0 %v822
    %1007 = vmatprep.subr.bf16.mxu0 0
    %1008 = vmatpush1.bf16.msra.mxu0 %v823
    %1009 = vmatprep.subr.bf16.mxu0 0
    %1010 = vmatpush1.bf16.msra.mxu0 %v824
    %1011 = vmatprep.subr.bf16.mxu0 0
    %1012 = vmatpush1.bf16.msra.mxu0 %v825
    %1013 = vmatprep.subr.bf16.mxu0 0
    %1014 = vmatpush1.bf16.msra.mxu0 %v826
    %1015 = vmatprep.subr.bf16.mxu0 0
    %1016 = vmatpush1.bf16.msra.mxu0 %v827
    %1017 = vmatprep.subr.bf16.mxu0 0
    %1018 = vmatpush1.bf16.msra.mxu0 %v828
    %1019 = vmatprep.subr.bf16.mxu0 0
    %1020 = vmatpush1.bf16.msra.mxu0 %v829
    %1021 = vmatprep.subr.bf16.mxu0 0
    %1022 = vmatpush1.bf16.msra.mxu0 %v830
    %1023 = vmatprep.subr.bf16.mxu0 0
    %1024 = vmatpush1.bf16.msra.mxu0 %v831
    %1025 = vmatprep.subr.bf16.mxu0 0
    %1026 = vmatpush1.bf16.msra.mxu0 %v832
    %1027 = vmatprep.mubr.bf16.mxu0 %v940
    %1028 = vmatmul.mubr.bf16.gmra.mrb[0].mxu0 %v939
    %v1029 = vpop.f32.mrb[0].mxu0
    %v1030 = vadd.f32 %v861, %v1029
    %v1031 = vpop.f32.mrb[0].mxu0
    %v1032 = vpop.f32.mrb[0].mxu0
    %v1033 = vadd.f32 %v862, %v1032
    %v1034 = vpop.f32.mrb[0].mxu0
    %1035 = vmatprep.mubr.bf16.mxu0 %v943
    %1036 = vmatmul.mubr.bf16.gmra.mrb[0].mxu0 %v942
    %v1037 = vpop.f32.mrb[0].mxu0
    %v1038 = vadd.f32 %v863, %v1037
    %v1039 = vpop.f32.mrb[0].mxu0
    %v1040 = vpop.f32.mrb[0].mxu0
    %v1041 = vadd.f32 %v864, %v1040
    %v1042 = vpop.f32.mrb[0].mxu0
    %1043 = vmatprep.mubr.bf16.mxu0 %v946
    %1044 = vmatmul.mubr.bf16.gmra.mrb[0].mxu0 %v945
    %v1045 = vpop.f32.mrb[0].mxu0
    %v1046 = vadd.f32 %v865, %v1045
    %v1047 = vpop.f32.mrb[0].mxu0
    %v1048 = vpop.f32.mrb[0].mxu0
    %v1049 = vadd.f32 %v866, %v1048
    %v1050 = vpop.f32.mrb[0].mxu0
    %1051 = vmatprep.mubr.bf16.mxu0 %v949
    %1052 = vmatmul.mubr.bf16.gmra.mrb[0].mxu0 %v948
    %v1053 = vpop.f32.mrb[0].mxu0
    %v1054 = vadd.f32 %v867, %v1053
    %v1055 = vpop.f32.mrb[0].mxu0
    %v1056 = vpop.f32.mrb[0].mxu0
    %v1057 = vadd.f32 %v868, %v1056
    %v1058 = vpop.f32.mrb[0].mxu0
    %1059 = vmatprep.mubr.bf16.mxu0 %v952
    %1060 = vmatmul.mubr.bf16.gmra.mrb[0].mxu0 %v951
    %v1061 = vpop.f32.mrb[0].mxu0
    %v1062 = vadd.f32 %v869, %v1061
    %v1063 = vpop.f32.mrb[0].mxu0
    %v1064 = vpop.f32.mrb[0].mxu0
    %v1065 = vadd.f32 %v870, %v1064
    %v1066 = vpop.f32.mrb[0].mxu0
    %1067 = vmatprep.mubr.bf16.mxu0 %v955
    %1068 = vmatmul.mubr.bf16.gmra.mrb[0].mxu0 %v954
    %v1069 = vpop.f32.mrb[0].mxu0
    %v1070 = vadd.f32 %v871, %v1069
    %v1071 = vpop.f32.mrb[0].mxu0
    %v1072 = vpop.f32.mrb[0].mxu0
    %v1073 = vadd.f32 %v872, %v1072
    %v1074 = vpop.f32.mrb[0].mxu0
    %1075 = vmatprep.mubr.bf16.mxu0 %v958
    %1076 = vmatmul.mubr.bf16.gmra.mrb[0].mxu0 %v957
    %v1077 = vpop.f32.mrb[0].mxu0
    %v1078 = vadd.f32 %v873, %v1077
    %v1079 = vpop.f32.mrb[0].mxu0
    %v1080 = vpop.f32.mrb[0].mxu0
    %v1081 = vpop.f32.mrb[0].mxu0
    %1082 = vdwg.mxu0
    %1083 = vmatprep.subr.bf16.mxu0 0
    %1084 = vmatpush1.bf16.msra.mxu0 %v833
    %1085 = vmatprep.subr.bf16.mxu0 0
    %1086 = vmatpush1.bf16.msra.mxu0 %v834
    %1087 = vmatprep.subr.bf16.mxu0 0
    %1088 = vmatpush1.bf16.msra.mxu0 0
    %1089 = vmatprep.subr.bf16.mxu0 0
    %1090 = vmatpush1.bf16.msra.mxu0 0
    %1091 = vmatprep.subr.bf16.mxu0 0
    %1092 = vmatpush1.bf16.msra.mxu0 0
    %1093 = vmatprep.subr.bf16.mxu0 0
    %1094 = vmatpush1.bf16.msra.mxu0 0
    %1095 = vmatprep.subr.bf16.mxu0 0
    %1096 = vmatpush1.bf16.msra.mxu0 0
    %1097 = vmatprep.subr.bf16.mxu0 0
    %1098 = vmatpush1.bf16.msra.mxu0 0
    %1099 = vmatprep.subr.bf16.mxu0 0
    %1100 = vmatpush1.bf16.msra.mxu0 0
    %1101 = vmatprep.subr.bf16.mxu0 0
    %1102 = vmatpush1.bf16.msra.mxu0 0
    %1103 = vmatprep.subr.bf16.mxu0 0
    %1104 = vmatpush1.bf16.msra.mxu0 0
    %1105 = vmatprep.subr.bf16.mxu0 0
    %1106 = vmatpush1.bf16.msra.mxu0 0
    %1107 = vmatprep.subr.bf16.mxu0 0
    %1108 = vmatpush1.bf16.msra.mxu0 0
    %1109 = vmatprep.subr.bf16.mxu0 0
    %1110 = vmatpush1.bf16.msra.mxu0 0
    %1111 = vmatprep.subr.bf16.mxu0 0
    %1112 = vmatpush1.bf16.msra.mxu0 0
    %1113 = vmatprep.subr.bf16.mxu0 0
    %1114 = vmatpush1.bf16.msra.mxu0 0
    %1115 = vmatprep.mubr.bf16.mxu0 0
    %1116 = vmatmul.mubr.bf16.gmra.mrb[0].mxu0 %v975
    %v1117 = vpop.f32.mrb[0].mxu0
    %v1118 = vadd.f32 %v1030, %v1117
    %v1119 = vpop.f32.mrb[0].mxu0
    %v1120 = vpop.f32.mrb[0].mxu0
    %v1121 = vadd.f32 %v1033, %v1120
    %v1122 = vpop.f32.mrb[0].mxu0
    %1123 = vmatprep.mubr.bf16.mxu0 0
    %1124 = vmatmul.mubr.bf16.gmra.mrb[0].mxu0 %v978
    %v1125 = vpop.f32.mrb[0].mxu0
    %v1126 = vadd.f32 %v1038, %v1125
    %v1127 = vpop.f32.mrb[0].mxu0
    %v1128 = vpop.f32.mrb[0].mxu0
    %v1129 = vadd.f32 %v1041, %v1128
    %v1130 = vpop.f32.mrb[0].mxu0
    %1131 = vmatprep.mubr.bf16.mxu0 0
    %1132 = vmatmul.mubr.bf16.gmra.mrb[0].mxu0 %v981
    %v1133 = vpop.f32.mrb[0].mxu0
    %v1134 = vadd.f32 %v1046, %v1133
    %v1135 = vpop.f32.mrb[0].mxu0
    %v1136 = vpop.f32.mrb[0].mxu0
    %v1137 = vadd.f32 %v1049, %v1136
    %v1138 = vpop.f32.mrb[0].mxu0
    %1139 = vmatprep.mubr.bf16.mxu0 0
    %1140 = vmatmul.mubr.bf16.gmra.mrb[0].mxu0 %v984
    %v1141 = vpop.f32.mrb[0].mxu0
    %v1142 = vadd.f32 %v1054, %v1141
    %v1143 = vpop.f32.mrb[0].mxu0
    %v1144 = vpop.f32.mrb[0].mxu0
    %v1145 = vadd.f32 %v1057, %v1144
    %v1146 = vpop.f32.mrb[0].mxu0
    %1147 = vmatprep.mubr.bf16.mxu0 0
    %1148 = vmatmul.mubr.bf16.gmra.mrb[0].mxu0 %v987
    %v1149 = vpop.f32.mrb[0].mxu0
    %v1150 = vadd.f32 %v1062, %v1149
    %v1151 = vpop.f32.mrb[0].mxu0
    %v1152 = vpop.f32.mrb[0].mxu0
    %v1153 = vadd.f32 %v1065, %v1152
    %v1154 = vpop.f32.mrb[0].mxu0
    %1155 = vmatprep.mubr.bf16.mxu0 0
    %1156 = vmatmul.mubr.bf16.gmra.mrb[0].mxu0 %v990
    %v1157 = vpop.f32.mrb[0].mxu0
    %v1158 = vadd.f32 %v1070, %v1157
    %v1159 = vpop.f32.mrb[0].mxu0
    %v1160 = vpop.f32.mrb[0].mxu0
    %v1161 = vadd.f32 %v1073, %v1160
    %v1162 = vpop.f32.mrb[0].mxu0
    %1163 = vmatprep.mubr.bf16.mxu0 0
    %1164 = vmatmul.mubr.bf16.gmra.mrb[0].mxu0 %v993
    %v1165 = vpop.f32.mrb[0].mxu0
    %v1166 = vadd.f32 %v1078, %v1165
    %v1167 = vpop.f32.mrb[0].mxu0
    %v1168 = vpop.f32.mrb[0].mxu0
    %v1169 = vpop.f32.mrb[0].mxu0
    %1170 = vdwg.mxu0
    %v1171 = vmul.f32 %v1118, 0.5
    %v1172 = vmul.f32 %v1121, 0.5
    %v1173 = vmul.f32 %v1126, 0.5
    %v1174 = vmul.f32 %v1129, 0.5
    %v1175 = vmul.f32 %v1134, 0.5
    %v1176 = vmul.f32 %v1137, 0.5
    %v1177 = vmul.f32 %v1142, 0.5
    %v1178 = vmul.f32 %v1145, 0.5
    %v1179 = vmul.f32 %v1150, 0.5
    %v1180 = vmul.f32 %v1153, 0.5
    %v1181 = vmul.f32 %v1158, 0.5
    %v1182 = vmul.f32 %v1161, 0.5
    %v1183 = vmul.f32 %v1166, 0.5
    %v1184 = vmul.f32 %v1118, 0.044715
    %v1185 = vmul.f32 %v1121, 0.044715
    %v1186 = vmul.f32 %v1126, 0.044715
    %v1187 = vmul.f32 %v1129, 0.044715
    %v1188 = vmul.f32 %v1134, 0.044715
    %v1189 = vmul.f32 %v1137, 0.044715
    %v1190 = vmul.f32 %v1142, 0.044715
    %v1191 = vmul.f32 %v1145, 0.044715
    %v1192 = vmul.f32 %v1150, 0.044715
    %v1193 = vmul.f32 %v1153, 0.044715
    %v1194 = vmul.f32 %v1158, 0.044715
    %v1195 = vmul.f32 %v1161, 0.044715
    %v1196 = vmul.f32 %v1166, 0.044715
    %v1197 = vmul.f32 %v1184, %v1118
    %v1198 = vmul.f32 %v1185, %v1121
    %v1199 = vmul.f32 %v1186, %v1126
    %v1200 = vmul.f32 %v1187, %v1129
    %v1201 = vmul.f32 %v1188, %v1134
    %v1202 = vmul.f32 %v1189, %v1137
    %v1203 = vmul.f32 %v1190, %v1142
    %v1204 = vmul.f32 %v1191, %v1145
    %v1205 = vmul.f32 %v1192, %v1150
    %v1206 = vmul.f32 %v1193, %v1153
    %v1207 = vmul.f32 %v1194, %v1158
    %v1208 = vmul.f32 %v1195, %v1161
    %v1209 = vmul.f32 %v1196, %v1166
    %v1210 = vmul.f32 %v1197, %v1118
    %v1211 = vmul.f32 %v1198, %v1121
    %v1212 = vmul.f32 %v1199, %v1126
    %v1213 = vmul.f32 %v1200, %v1129
    %v1214 = vmul.f32 %v1201, %v1134
    %v1215 = vmul.f32 %v1202, %v1137
    %v1216 = vmul.f32 %v1203, %v1142
    %v1217 = vmul.f32 %v1204, %v1145
    %v1218 = vmul.f32 %v1205, %v1150
    %v1219 = vmul.f32 %v1206, %v1153
    %v1220 = vmul.f32 %v1207, %v1158
    %v1221 = vmul.f32 %v1208, %v1161
    %v1222 = vmul.f32 %v1209, %v1166
    %v1223 = vadd.f32 %v1118, %v1210
    %v1224 = vadd.f32 %v1121, %v1211
    %v1225 = vadd.f32 %v1126, %v1212
    %v1226 = vadd.f32 %v1129, %v1213
    %v1227 = vadd.f32 %v1134, %v1214
    %v1228 = vadd.f32 %v1137, %v1215
    %v1229 = vadd.f32 %v1142, %v1216
    %v1230 = vadd.f32 %v1145, %v1217
    %v1231 = vadd.f32 %v1150, %v1218
    %v1232 = vadd.f32 %v1153, %v1219
    %v1233 = vadd.f32 %v1158, %v1220
    %v1234 = vadd.f32 %v1161, %v1221
    %v1235 = vadd.f32 %v1166, %v1222
    %v1236 = vmul.f32 %v1223, 0.7978846
    %v1237 = vmul.f32 %v1224, 0.7978846
    %v1238 = vmul.f32 %v1225, 0.7978846
    %v1239 = vmul.f32 %v1226, 0.7978846
    %v1240 = vmul.f32 %v1227, 0.7978846
    %v1241 = vmul.f32 %v1228, 0.7978846
    %v1242 = vmul.f32 %v1229, 0.7978846
    %v1243 = vmul.f32 %v1230, 0.7978846
    %v1244 = vmul.f32 %v1231, 0.7978846
    %v1245 = vmul.f32 %v1232, 0.7978846
    %v1246 = vmul.f32 %v1233, 0.7978846
    %v1247 = vmul.f32 %v1234, 0.7978846
    %v1248 = vmul.f32 %v1235, 0.7978846
    %v1249 = vtanh.pop %v1236
    %v1250 = vtanh.pop %v1237
    %v1251 = vtanh.pop %v1238
    %v1252 = vtanh.pop %v1239
    %v1253 = vtanh.pop %v1240
    %v1254 = vtanh.pop %v1241
    %v1255 = vtanh.pop %v1242
    %v1256 = vtanh.pop %v1243
    %v1257 = vtanh.pop %v1244
    %v1258 = vtanh.pop %v1245
    %v1259 = vtanh.pop %v1246
    %v1260 = vtanh.pop %v1247
    %v1261 = vtanh.pop %v1248
    %v1262 = vadd.f32 %v1249, 1.0
    %v1263 = vadd.f32 %v1250, 1.0
    %v1264 = vadd.f32 %v1251, 1.0
    %v1265 = vadd.f32 %v1252, 1.0
    %v1266 = vadd.f32 %v1253, 1.0
    %v1267 = vadd.f32 %v1254, 1.0
    %v1268 = vadd.f32 %v1255, 1.0
    %v1269 = vadd.f32 %v1256, 1.0
    %v1270 = vadd.f32 %v1257, 1.0
    %v1271 = vadd.f32 %v1258, 1.0
    %v1272 = vadd.f32 %v1259, 1.0
    %v1273 = vadd.f32 %v1260, 1.0
    %v1274 = vadd.f32 %v1261, 1.0
    %v1275 = vmul.f32 %v1171, %v1262
    %v1276 = vmul.f32 %v1172, %v1263
    %v1277 = vmul.f32 %v1173, %v1264
    %v1278 = vmul.f32 %v1174, %v1265
    %v1279 = vmul.f32 %v1175, %v1266
    %v1280 = vmul.f32 %v1176, %v1267
    %v1281 = vmul.f32 %v1177, %v1268
    %v1282 = vmul.f32 %v1178, %v1269
    %v1283 = vmul.f32 %v1179, %v1270
    %v1284 = vmul.f32 %v1180, %v1271
    %v1285 = vmul.f32 %v1181, %v1272
    %v1286 = vmul.f32 %v1182, %v1273
    %v1287 = vmul.f32 %v1183, %v1274
    %v1288 = vld [vmem:[%s11] sm:$0xff]
    %v1289 = vld [vmem:[%s11 + $0x8] sm:$0xff]
    %v1290 = vld [vmem:[%s11 + $0x10] sm:$0xff]
    %v1291 = vld [vmem:[%s11 + $0x18] sm:$0xff]
    %v1292 = vld [vmem:[%s11 + $0x20] sm:$0xff]
    %v1293 = vld [vmem:[%s11 + $0x28] sm:$0xff]
    %v1294 = vld [vmem:[%s11 + $0x30] sm:$0xff]
    %v1295 = vld [vmem:[%s11 + $0x38] sm:$0xff]
    %v1296 = vld [vmem:[%s11 + $0x40] sm:$0xff]
    %v1297 = vld [vmem:[%s11 + $0x48] sm:$0xff]
    %v1298 = vld [vmem:[%s11 + $0x50] sm:$0xff]
    %v1299 = vld [vmem:[%s11 + $0x58] sm:$0xff]
    %v1300 = vld [vmem:[%s11 + $0x60] sm:$0xff]
    %1302 = vset.pattern.permute.xlu0 0
    %1303 = vperm.xlu0 %1302, %v1288
    %v1304 = vpop.permute.xlu0 %1303
    %1307 = vset.pattern.permute.xlu0 0
    %1308 = vperm.xlu0 %1307, %v1289
    %v1309 = vpop.permute.xlu0 %1308
    %1312 = vset.pattern.permute.xlu0 0
    %1313 = vperm.xlu0 %1312, %v1290
    %v1314 = vpop.permute.xlu0 %1313
    %1317 = vset.pattern.permute.xlu0 0
    %1318 = vperm.xlu0 %1317, %v1291
    %v1319 = vpop.permute.xlu0 %1318
    %1322 = vset.pattern.permute.xlu0 0
    %1323 = vperm.xlu0 %1322, %v1292
    %v1324 = vpop.permute.xlu0 %1323
    %1327 = vset.pattern.permute.xlu0 0
    %1328 = vperm.xlu0 %1327, %v1293
    %v1329 = vpop.permute.xlu0 %1328
    %1332 = vset.pattern.permute.xlu0 0
    %1333 = vperm.xlu0 %1332, %v1294
    %v1334 = vpop.permute.xlu0 %1333
    %1337 = vset.pattern.permute.xlu0 0
    %1338 = vperm.xlu0 %1337, %v1295
    %v1339 = vpop.permute.xlu0 %1338
    %1342 = vset.pattern.permute.xlu0 0
    %1343 = vperm.xlu0 %1342, %v1296
    %v1344 = vpop.permute.xlu0 %1343
    %1347 = vset.pattern.permute.xlu0 0
    %1348 = vperm.xlu0 %1347, %v1297
    %v1349 = vpop.permute.xlu0 %1348
    %1352 = vset.pattern.permute.xlu0 0
    %1353 = vperm.xlu0 %1352, %v1298
    %v1354 = vpop.permute.xlu0 %1353
    %1357 = vset.pattern.permute.xlu0 0
    %1358 = vperm.xlu0 %1357, %v1299
    %v1359 = vpop.permute.xlu0 %1358
    %1362 = vset.pattern.permute.xlu0 0
    %1363 = vperm.xlu0 %1362, %v1300
    %v1364 = vpop.permute.xlu0 %1363
    %v1366 = vmul.f32 %v1275, %v1304
    %v1367 = vmul.f32 %v1276, %v1309
    %v1368 = vmul.f32 %v1277, %v1314
    %v1369 = vmul.f32 %v1278, %v1319
    %v1370 = vmul.f32 %v1279, %v1324
    %v1371 = vmul.f32 %v1280, %v1329
    %v1372 = vmul.f32 %v1281, %v1334
    %v1373 = vmul.f32 %v1282, %v1339
    %v1374 = vmul.f32 %v1283, %v1344
    %v1375 = vmul.f32 %v1284, %v1349
    %v1376 = vmul.f32 %v1285, %v1354
    %v1377 = vmul.f32 %v1286, %v1359
    %v1378 = vmul.f32 %v1287, %v1364
    %v1379 = vpack.c.bf16 %v1367, %v1366
    %v1380 = vpack.c.bf16 %v1369, %v1368
    %v1381 = vpack.c.bf16 %v1371, %v1370
    %v1382 = vpack.c.bf16 %v1373, %v1372
    %v1383 = vpack.c.bf16 %v1375, %v1374
    %v1384 = vpack.c.bf16 %v1377, %v1376
    %v1385 = vpack.c.bf16 %v1378, %v1378
    %v1386 = vld [vmem:[%s10] sm:$0xf]
    %v1387 = vld [vmem:[%s10 + $0x4] sm:$0xf]
    %v1388 = vld [vmem:[%s10 + $0x8] sm:$0xf]
    %v1389 = vld [vmem:[%s10 + $0xc] sm:$0xf]
    %v1390 = vld [vmem:[%s10 + $0x10] sm:$0xf]
    %v1391 = vld [vmem:[%s10 + $0x14] sm:$0xf]
    %v1392 = vld [vmem:[%s10 + $0x18] sm:$0xf]
    %v1393 = vld [vmem:[%s10 + $0x1c] sm:$0xf]
    %v1394 = vld [vmem:[%s10 + $0x20] sm:$0xf]
    %v1395 = vld [vmem:[%s10 + $0x24] sm:$0xf]
    %v1396 = vld [vmem:[%s10 + $0x28] sm:$0xf]
    %v1397 = vld [vmem:[%s10 + $0x2c] sm:$0xf]
    %v1398 = vld [vmem:[%s10 + $0x30] sm:$0xf]
    %v1399 = vld [vmem:[%s10 + $0x34] sm:$0xf]
    %v1400 = vld [vmem:[%s10 + $0x38] sm:$0xf]
    %v1401 = vld [vmem:[%s10 + $0x3c] sm:$0xf]
    %v1402 = vld [vmem:[%s10 + $0x40] sm:$0xf]
    %v1403 = vld [vmem:[%s10 + $0x44] sm:$0xf]
    %v1404 = vld [vmem:[%s10 + $0x48] sm:$0xf]
    %v1405 = vld [vmem:[%s10 + $0x4c] sm:$0xf]
    %v1406 = vld [vmem:[%s10 + $0x50] sm:$0xf]
    %v1407 = vld [vmem:[%s10 + $0x54] sm:$0xf]
    %v1408 = vld [vmem:[%s10 + $0x58] sm:$0xf]
    %v1409 = vld [vmem:[%s10 + $0x5c] sm:$0xf]
    %v1410 = vld [vmem:[%s10 + $0x60] sm:$0xf]
    %v1411 = vld [vmem:[%s10 + $0x64] sm:$0xf]
    %v1412 = vld [vmem:[%s10 + $0x68] sm:$0xf]
    %v1413 = vld [vmem:[%s10 + $0x6c] sm:$0xf]
    %v1414 = vld [vmem:[%s10 + $0x70] sm:$0xf]
    %v1415 = vld [vmem:[%s10 + $0x74] sm:$0xf]
    %v1416 = vld [vmem:[%s10 + $0x78] sm:$0xf]
    %v1417 = vld [vmem:[%s10 + $0x7c] sm:$0xf]
    %v1418 = vld [vmem:[%s10 + $0x80] sm:$0xf]
    %v1419 = vld [vmem:[%s10 + $0x84] sm:$0xf]
    %v1420 = vld [vmem:[%s10 + $0x88] sm:$0xf]
    %v1421 = vld [vmem:[%s10 + $0x8c] sm:$0xf]
    %v1458 = vunpack.c.l.b16 %v1386
    %v1459 = vunpack.c.l.b16 %v1387
    %v1460 = vunpack.c.l.b16 %v1388
    %v1461 = vunpack.c.l.b16 %v1389
    %v1462 = vunpack.c.l.b16 %v1390
    %v1463 = vunpack.c.l.b16 %v1391
    %v1464 = vunpack.c.l.b16 %v1392
    %v1465 = vunpack.c.l.b16 %v1393
    %v1466 = vunpack.c.l.b16 %v1394
    %v1467 = vunpack.c.l.b16 %v1395
    %v1468 = vunpack.c.l.b16 %v1396
    %v1469 = vunpack.c.l.b16 %v1397
    %v1470 = vunpack.c.l.b16 %v1398
    %v1471 = vunpack.c.l.b16 %v1399
    %v1472 = vunpack.c.l.b16 %v1400
    %v1473 = vunpack.c.l.b16 %v1401
    %v1474 = vunpack.c.l.b16 %v1402
    %v1475 = vunpack.c.l.b16 %v1403
    %v1476 = vunpack.c.l.b16 %v1404
    %v1477 = vunpack.c.l.b16 %v1405
    %v1478 = vunpack.c.l.b16 %v1406
    %v1479 = vunpack.c.l.b16 %v1407
    %v1480 = vunpack.c.l.b16 %v1408
    %v1481 = vunpack.c.l.b16 %v1409
    %v1482 = vunpack.c.l.b16 %v1410
    %v1483 = vunpack.c.l.b16 %v1411
    %v1484 = vunpack.c.l.b16 %v1412
    %v1485 = vunpack.c.l.b16 %v1413
    %v1486 = vunpack.c.l.b16 %v1414
    %v1487 = vunpack.c.l.b16 %v1415
    %v1488 = vunpack.c.l.b16 %v1416
    %v1489 = vunpack.c.l.b16 %v1417
    %v1490 = vunpack.c.l.b16 %v1418
    %v1491 = vunpack.c.l.b16 %v1419
    %v1492 = vunpack.c.l.b16 %v1420
    %v1493 = vunpack.c.l.b16 %v1421
    %v1494 = vpack.c.b16 %v1459, %v1458
    %v1495 = vpack.c.b16 %v1461, %v1460
    %v1496 = vpack.c.b16 %v1463, %v1462
    %v1497 = vpack.c.b16 %v1465, %v1464
    %v1498 = vpack.c.b16 %v1467, %v1466
    %v1499 = vpack.c.b16 %v1469, %v1468
    %v1500 = vpack.c.b16 %v1471, %v1470
    %v1501 = vpack.c.b16 %v1473, %v1472
    %v1502 = vpack.c.b16 %v1475, %v1474
    %v1503 = vpack.c.b16 %v1477, %v1476
    %v1504 = vpack.c.b16 %v1479, %v1478
    %v1505 = vpack.c.b16 %v1481, %v1480
    %v1506 = vpack.c.b16 %v1483, %v1482
    %v1507 = vpack.c.b16 %v1485, %v1484
    %v1508 = vpack.c.b16 %v1487, %v1486
    %v1509 = vpack.c.b16 %v1489, %v1488
    %v1510 = vpack.c.b16 %v1491, %v1490
    %v1511 = vpack.c.b16 %v1493, %v1492
    %vm1512 = vcmask 850944
    %v1514 = vsel %vm1512, %v1494, 0
    %v1517 = vsel %vm1512, %v1495, 0
    %v1520 = vsel %vm1512, %v1496, 0
    %v1523 = vsel %vm1512, %v1497, 0
    %v1526 = vsel %vm1512, %v1498, 0
    %v1529 = vsel %vm1512, %v1499, 0
    %v1532 = vsel %vm1512, %v1500, 0
    %v1535 = vsel %vm1512, %v1501, 0
    %v1538 = vsel %vm1512, %v1502, 0
    %v1541 = vsel %vm1512, %v1503, 0
    %v1544 = vsel %vm1512, %v1504, 0
    %v1547 = vsel %vm1512, %v1505, 0
    %v1550 = vsel %vm1512, %v1506, 0
    %v1553 = vsel %vm1512, %v1507, 0
    %v1556 = vsel %vm1512, %v1508, 0
    %v1559 = vsel %vm1512, %v1509, 0
    %v1562 = vsel %vm1512, %v1510, 0
    %v1565 = vsel %vm1512, %v1511, 0
    %vm1567 = vcmask 1043456
    %v1569 = vsel %vm1567, %v1385, 0
    %1571 = vmatprep.subr.bf16.mxu0 0
    %1572 = vmatpush1.bf16.msra.mxu0 %v1379
    %1573 = vmatprep.subr.bf16.mxu0 0
    %1574 = vmatpush1.bf16.msra.mxu0 %v1380
    %1575 = vmatprep.subr.bf16.mxu0 0
    %1576 = vmatpush1.bf16.msra.mxu0 %v1381
    %1577 = vmatprep.subr.bf16.mxu0 0
    %1578 = vmatpush1.bf16.msra.mxu0 %v1382
    %1579 = vmatprep.subr.bf16.mxu0 0
    %1580 = vmatpush1.bf16.msra.mxu0 %v1383
    %1581 = vmatprep.subr.bf16.mxu0 0
    %1582 = vmatpush1.bf16.msra.mxu0 %v1384
    %1583 = vmatprep.subr.bf16.mxu0 0
    %1584 = vmatpush1.bf16.msra.mxu0 %v1569
    %1585 = vmatprep.subr.bf16.mxu0 0
    %1586 = vmatpush1.bf16.msra.mxu0 0
    %1587 = vmatprep.subr.bf16.mxu0 0
    %1588 = vmatpush1.bf16.msra.mxu0 0
    %1589 = vmatprep.subr.bf16.mxu0 0
    %1590 = vmatpush1.bf16.msra.mxu0 0
    %1591 = vmatprep.subr.bf16.mxu0 0
    %1592 = vmatpush1.bf16.msra.mxu0 0
    %1593 = vmatprep.subr.bf16.mxu0 0
    %1594 = vmatpush1.bf16.msra.mxu0 0
    %1595 = vmatprep.subr.bf16.mxu0 0
    %1596 = vmatpush1.bf16.msra.mxu0 0
    %1597 = vmatprep.subr.bf16.mxu0 0
    %1598 = vmatpush1.bf16.msra.mxu0 0
    %1599 = vmatprep.subr.bf16.mxu0 0
    %1600 = vmatpush1.bf16.msra.mxu0 0
    %1601 = vmatprep.subr.bf16.mxu0 0
    %1602 = vmatpush1.bf16.msra.mxu0 0
    %1603 = vmatprep.mubr.bf16.mxu0 0
    %1604 = vmatmul.mubr.bf16.gmra.mrb[0].mxu0 %v1514
    %v1605 = vpop.f32.mrb[0].mxu0
    %v1606 = vadd.f32 0.0, %v1605
    %v1607 = vpop.f32.mrb[0].mxu0
    %v1608 = vpop.f32.mrb[0].mxu0
    %v1609 = vadd.f32 0.0, %v1608
    %v1610 = vpop.f32.mrb[0].mxu0
    %1611 = vmatprep.mubr.bf16.mxu0 0
    %1612 = vmatmul.mubr.bf16.gmra.mrb[0].mxu0 %v1517
    %v1613 = vpop.f32.mrb[0].mxu0
    %v1614 = vadd.f32 0.0, %v1613
    %v1615 = vpop.f32.mrb[0].mxu0
    %v1616 = vpop.f32.mrb[0].mxu0
    %v1617 = vadd.f32 0.0, %v1616
    %v1618 = vpop.f32.mrb[0].mxu0
    %1619 = vmatprep.mubr.bf16.mxu0 0
    %1620 = vmatmul.mubr.bf16.gmra.mrb[0].mxu0 %v1520
    %v1621 = vpop.f32.mrb[0].mxu0
    %v1622 = vadd.f32 0.0, %v1621
    %v1623 = vpop.f32.mrb[0].mxu0
    %v1624 = vpop.f32.mrb[0].mxu0
    %v1625 = vadd.f32 0.0, %v1624
    %v1626 = vpop.f32.mrb[0].mxu0
    %1627 = vmatprep.mubr.bf16.mxu0 0
    %1628 = vmatmul.mubr.bf16.gmra.mrb[0].mxu0 %v1523
    %v1629 = vpop.f32.mrb[0].mxu0
    %v1630 = vadd.f32 0.0, %v1629
    %v1631 = vpop.f32.mrb[0].mxu0
    %v1632 = vpop.f32.mrb[0].mxu0
    %v1633 = vadd.f32 0.0, %v1632
    %v1634 = vpop.f32.mrb[0].mxu0
    %1635 = vmatprep.mubr.bf16.mxu0 0
    %1636 = vmatmul.mubr.bf16.gmra.mrb[0].mxu0 %v1526
    %v1637 = vpop.f32.mrb[0].mxu0
    %v1638 = vadd.f32 0.0, %v1637
    %v1639 = vpop.f32.mrb[0].mxu0
    %v1640 = vpop.f32.mrb[0].mxu0
    %v1641 = vadd.f32 0.0, %v1640
    %v1642 = vpop.f32.mrb[0].mxu0
    %1643 = vmatprep.mubr.bf16.mxu0 0
    %1644 = vmatmul.mubr.bf16.gmra.mrb[0].mxu0 %v1529
    %v1645 = vpop.f32.mrb[0].mxu0
    %v1646 = vadd.f32 0.0, %v1645
    %v1647 = vpop.f32.mrb[0].mxu0
    %v1648 = vpop.f32.mrb[0].mxu0
    %v1649 = vadd.f32 0.0, %v1648
    %v1650 = vpop.f32.mrb[0].mxu0
    %1651 = vmatprep.mubr.bf16.mxu0 0
    %1652 = vmatmul.mubr.bf16.gmra.mrb[0].mxu0 %v1532
    %v1653 = vpop.f32.mrb[0].mxu0
    %v1654 = vadd.f32 0.0, %v1653
    %v1655 = vpop.f32.mrb[0].mxu0
    %v1656 = vpop.f32.mrb[0].mxu0
    %v1657 = vadd.f32 0.0, %v1656
    %v1658 = vpop.f32.mrb[0].mxu0
    %1659 = vmatprep.mubr.bf16.mxu0 0
    %1660 = vmatmul.mubr.bf16.gmra.mrb[0].mxu0 %v1535
    %v1661 = vpop.f32.mrb[0].mxu0
    %v1662 = vadd.f32 0.0, %v1661
    %v1663 = vpop.f32.mrb[0].mxu0
    %v1664 = vpop.f32.mrb[0].mxu0
    %v1665 = vadd.f32 0.0, %v1664
    %v1666 = vpop.f32.mrb[0].mxu0
    %1667 = vmatprep.mubr.bf16.mxu0 0
    %1668 = vmatmul.mubr.bf16.gmra.mrb[0].mxu0 %v1538
    %v1669 = vpop.f32.mrb[0].mxu0
    %v1670 = vadd.f32 0.0, %v1669
    %v1671 = vpop.f32.mrb[0].mxu0
    %v1672 = vpop.f32.mrb[0].mxu0
    %v1673 = vadd.f32 0.0, %v1672
    %v1674 = vpop.f32.mrb[0].mxu0
    %1675 = vmatprep.mubr.bf16.mxu0 0
    %1676 = vmatmul.mubr.bf16.gmra.mrb[0].mxu0 %v1541
    %v1677 = vpop.f32.mrb[0].mxu0
    %v1678 = vadd.f32 0.0, %v1677
    %v1679 = vpop.f32.mrb[0].mxu0
    %v1680 = vpop.f32.mrb[0].mxu0
    %v1681 = vadd.f32 0.0, %v1680
    %v1682 = vpop.f32.mrb[0].mxu0
    %1683 = vmatprep.mubr.bf16.mxu0 0
    %1684 = vmatmul.mubr.bf16.gmra.mrb[0].mxu0 %v1544
    %v1685 = vpop.f32.mrb[0].mxu0
    %v1686 = vadd.f32 0.0, %v1685
    %v1687 = vpop.f32.mrb[0].mxu0
    %v1688 = vpop.f32.mrb[0].mxu0
    %v1689 = vadd.f32 0.0, %v1688
    %v1690 = vpop.f32.mrb[0].mxu0
    %1691 = vmatprep.mubr.bf16.mxu0 0
    %1692 = vmatmul.mubr.bf16.gmra.mrb[0].mxu0 %v1547
    %v1693 = vpop.f32.mrb[0].mxu0
    %v1694 = vadd.f32 0.0, %v1693
    %v1695 = vpop.f32.mrb[0].mxu0
    %v1696 = vpop.f32.mrb[0].mxu0
    %v1697 = vadd.f32 0.0, %v1696
    %v1698 = vpop.f32.mrb[0].mxu0
    %1699 = vmatprep.mubr.bf16.mxu0 0
    %1700 = vmatmul.mubr.bf16.gmra.mrb[0].mxu0 %v1550
    %v1701 = vpop.f32.mrb[0].mxu0
    %v1702 = vadd.f32 0.0, %v1701
    %v1703 = vpop.f32.mrb[0].mxu0
    %v1704 = vpop.f32.mrb[0].mxu0
    %v1705 = vadd.f32 0.0, %v1704
    %v1706 = vpop.f32.mrb[0].mxu0
    %1707 = vmatprep.mubr.bf16.mxu0 0
    %1708 = vmatmul.mubr.bf16.gmra.mrb[0].mxu0 %v1553
    %v1709 = vpop.f32.mrb[0].mxu0
    %v1710 = vadd.f32 0.0, %v1709
    %v1711 = vpop.f32.mrb[0].mxu0
    %v1712 = vpop.f32.mrb[0].mxu0
    %v1713 = vadd.f32 0.0, %v1712
    %v1714 = vpop.f32.mrb[0].mxu0
    %1715 = vmatprep.mubr.bf16.mxu0 0
    %1716 = vmatmul.mubr.bf16.gmra.mrb[0].mxu0 %v1556
    %v1717 = vpop.f32.mrb[0].mxu0
    %v1718 = vadd.f32 0.0, %v1717
    %v1719 = vpop.f32.mrb[0].mxu0
    %v1720 = vpop.f32.mrb[0].mxu0
    %v1721 = vadd.f32 0.0, %v1720
    %v1722 = vpop.f32.mrb[0].mxu0
    %1723 = vmatprep.mubr.bf16.mxu0 0
    %1724 = vmatmul.mubr.bf16.gmra.mrb[0].mxu0 %v1559
    %v1725 = vpop.f32.mrb[0].mxu0
    %v1726 = vadd.f32 0.0, %v1725
    %v1727 = vpop.f32.mrb[0].mxu0
    %v1728 = vpop.f32.mrb[0].mxu0
    %v1729 = vadd.f32 0.0, %v1728
    %v1730 = vpop.f32.mrb[0].mxu0
    %1731 = vmatprep.mubr.bf16.mxu0 0
    %1732 = vmatmul.mubr.bf16.gmra.mrb[0].mxu0 %v1562
    %v1733 = vpop.f32.mrb[0].mxu0
    %v1734 = vadd.f32 0.0, %v1733
    %v1735 = vpop.f32.mrb[0].mxu0
    %v1736 = vpop.f32.mrb[0].mxu0
    %v1737 = vadd.f32 0.0, %v1736
    %v1738 = vpop.f32.mrb[0].mxu0
    %1739 = vmatprep.mubr.bf16.mxu0 0
    %1740 = vmatmul.mubr.bf16.gmra.mrb[0].mxu0 %v1565
    %v1741 = vpop.f32.mrb[0].mxu0
    %v1742 = vadd.f32 0.0, %v1741
    %v1743 = vpop.f32.mrb[0].mxu0
    %v1744 = vpop.f32.mrb[0].mxu0
    %v1745 = vadd.f32 0.0, %v1744
    %v1746 = vpop.f32.mrb[0].mxu0
    %1747 = vdwg.mxu0
    %v1748 = vpack.c.bf16 %v1609, %v1606
    %v1749 = vpack.c.bf16 %v1617, %v1614
    %v1750 = vpack.c.bf16 %v1625, %v1622
    %v1751 = vpack.c.bf16 %v1633, %v1630
    %v1752 = vpack.c.bf16 %v1641, %v1638
    %v1753 = vpack.c.bf16 %v1649, %v1646
    %v1754 = vpack.c.bf16 %v1657, %v1654
    %v1755 = vpack.c.bf16 %v1665, %v1662
    %v1756 = vpack.c.bf16 %v1673, %v1670
    %v1757 = vpack.c.bf16 %v1681, %v1678
    %v1758 = vpack.c.bf16 %v1689, %v1686
    %v1759 = vpack.c.bf16 %v1697, %v1694
    %v1760 = vpack.c.bf16 %v1705, %v1702
    %v1761 = vpack.c.bf16 %v1713, %v1710
    %v1762 = vpack.c.bf16 %v1721, %v1718
    %v1763 = vpack.c.bf16 %v1729, %v1726
    %v1764 = vpack.c.bf16 %v1737, %v1734
    %v1765 = vpack.c.bf16 %v1745, %v1742
    %v1766 = vld [vmem:[%s7] sm:$0x1]
    %v1768 = vlaneseq
    %v1769 = vshrl.u32 %v1768, 7
    %v1770 = vsub.s32 0, %v1769
    %v1771 = vrot.slane %v1766, %v1770
    %v1773 = vadd.f32 %v43, %v1771
    %v1774 = vadd.f32 %v44, %v1771
    %v1775 = vadd.f32 %v45, %v1771
    %v1776 = vadd.f32 %v46, %v1771
    %v1777 = vld [vmem:[%s6] sm:$0xf]
    %v1778 = vld [vmem:[%s6 + $0x4] sm:$0xf]
    %v1779 = vld [vmem:[%s6 + $0x8] sm:$0xf]
    %v1780 = vld [vmem:[%s6 + $0xc] sm:$0xf]
    %v1781 = vld [vmem:[%s6 + $0x10] sm:$0xf]
    %v1782 = vld [vmem:[%s6 + $0x14] sm:$0xf]
    %v1789 = vunpack.c.l.b16 %v1777
    %v1790 = vunpack.c.l.b16 %v1778
    %v1791 = vunpack.c.l.b16 %v1779
    %v1792 = vunpack.c.l.b16 %v1780
    %v1793 = vunpack.c.l.b16 %v1781
    %v1794 = vunpack.c.l.b16 %v1782
    %v1795 = vpack.c.b16 %v1790, %v1789
    %v1796 = vpack.c.b16 %v1792, %v1791
    %v1797 = vpack.c.b16 %v1794, %v1793
    %vm1801 = vcmask 392192
    %v1803 = vsel %vm1801, %v1748, 0
    %v1806 = vsel %vm1801, %v1749, 0
    %1808 = vmatprep.subr.bf16.mxu0 0
    %1809 = vmatpush1.bf16.msra.mxu0 %v1795
    %1810 = vmatprep.subr.bf16.mxu0 0
    %1811 = vmatpush1.bf16.msra.mxu0 %v1796
    %1812 = vmatprep.subr.bf16.mxu0 0
    %1813 = vmatpush1.bf16.msra.mxu0 %v1797
    %1814 = vmatprep.subr.bf16.mxu0 0
    %1815 = vmatpush1.bf16.msra.mxu0 0
    %1816 = vmatprep.subr.bf16.mxu0 0
    %1817 = vmatpush1.bf16.msra.mxu0 0
    %1818 = vmatprep.subr.bf16.mxu0 0
    %1819 = vmatpush1.bf16.msra.mxu0 0
    %1820 = vmatprep.subr.bf16.mxu0 0
    %1821 = vmatpush1.bf16.msra.mxu0 0
    %1822 = vmatprep.subr.bf16.mxu0 0
    %1823 = vmatpush1.bf16.msra.mxu0 0
    %1824 = vmatprep.subr.bf16.mxu0 0
    %1825 = vmatpush1.bf16.msra.mxu0 0
    %1826 = vmatprep.subr.bf16.mxu0 0
    %1827 = vmatpush1.bf16.msra.mxu0 0
    %1828 = vmatprep.subr.bf16.mxu0 0
    %1829 = vmatpush1.bf16.msra.mxu0 0
    %1830 = vmatprep.subr.bf16.mxu0 0
    %1831 = vmatpush1.bf16.msra.mxu0 0
    %1832 = vmatprep.subr.bf16.mxu0 0
    %1833 = vmatpush1.bf16.msra.mxu0 0
    %1834 = vmatprep.subr.bf16.mxu0 0
    %1835 = vmatpush1.bf16.msra.mxu0 0
    %1836 = vmatprep.subr.bf16.mxu0 0
    %1837 = vmatpush1.bf16.msra.mxu0 0
    %1838 = vmatprep.subr.bf16.mxu0 0
    %1839 = vmatpush1.bf16.msra.mxu0 0
    %1840 = vmatprep.mubr.bf16.mxu0 0
    %1841 = vmatmul.mubr.bf16.gmra.mrb[0].mxu0 %v1803
    %v1842 = vpop.f32.mrb[0].mxu0
    %v1843 = vadd.f32 0.0, %v1842
    %v1844 = vpop.f32.mrb[0].mxu0
    %v1845 = vpop.f32.mrb[0].mxu0
    %v1846 = vadd.f32 0.0, %v1845
    %v1847 = vpop.f32.mrb[0].mxu0
    %1848 = vmatprep.mubr.bf16.mxu0 0
    %1849 = vmatmul.mubr.bf16.gmra.mrb[0].mxu0 %v1806
    %v1850 = vpop.f32.mrb[0].mxu0
    %v1851 = vadd.f32 0.0, %v1850
    %v1852 = vpop.f32.mrb[0].mxu0
    %v1853 = vpop.f32.mrb[0].mxu0
    %v1854 = vadd.f32 0.0, %v1853
    %v1855 = vpop.f32.mrb[0].mxu0
    %1856 = vdwg.mxu0
    %v1857 = vadd.f32 %v1773, %v1843
    %v1858 = vadd.f32 %v1774, %v1846
    %v1859 = vadd.f32 %v1775, %v1851
    %v1860 = vadd.f32 %v1776, %v1854
    %v1861 = vld [vmem:[%s6 + $0x18] sm:$0xf]
    %v1862 = vld [vmem:[%s6 + $0x1c] sm:$0xf]
    %v1863 = vld [vmem:[%s6 + $0x20] sm:$0xf]
    %v1864 = vld [vmem:[%s6 + $0x24] sm:$0xf]
    %v1865 = vld [vmem:[%s6 + $0x28] sm:$0xf]
    %v1866 = vld [vmem:[%s6 + $0x2c] sm:$0xf]
    %v1873 = vunpack.c.l.b16 %v1861
    %v1874 = vunpack.c.l.b16 %v1862
    %v1875 = vunpack.c.l.b16 %v1863
    %v1876 = vunpack.c.l.b16 %v1864
    %v1877 = vunpack.c.l.b16 %v1865
    %v1878 = vunpack.c.l.b16 %v1866
    %v1879 = vpack.c.b16 %v1874, %v1873
    %v1880 = vpack.c.b16 %v1876, %v1875
    %v1881 = vpack.c.b16 %v1878, %v1877
    %v1886 = vsel %vm1801, %v1750, 0
    %v1889 = vsel %vm1801, %v1751, 0
    %1891 = vmatprep.subr.bf16.mxu0 0
    %1892 = vmatpush1.bf16.msra.mxu0 %v1879
    %1893 = vmatprep.subr.bf16.mxu0 0
    %1894 = vmatpush1.bf16.msra.mxu0 %v1880
    %1895 = vmatprep.subr.bf16.mxu0 0
    %1896 = vmatpush1.bf16.msra.mxu0 %v1881
    %1897 = vmatprep.subr.bf16.mxu0 0
    %1898 = vmatpush1.bf16.msra.mxu0 0
    %1899 = vmatprep.subr.bf16.mxu0 0
    %1900 = vmatpush1.bf16.msra.mxu0 0
    %1901 = vmatprep.subr.bf16.mxu0 0
    %1902 = vmatpush1.bf16.msra.mxu0 0
    %1903 = vmatprep.subr.bf16.mxu0 0
    %1904 = vmatpush1.bf16.msra.mxu0 0
    %1905 = vmatprep.subr.bf16.mxu0 0
    %1906 = vmatpush1.bf16.msra.mxu0 0
    %1907 = vmatprep.subr.bf16.mxu0 0
    %1908 = vmatpush1.bf16.msra.mxu0 0
    %1909 = vmatprep.subr.bf16.mxu0 0
    %1910 = vmatpush1.bf16.msra.mxu0 0
    %1911 = vmatprep.subr.bf16.mxu0 0
    %1912 = vmatpush1.bf16.msra.mxu0 0
    %1913 = vmatprep.subr.bf16.mxu0 0
    %1914 = vmatpush1.bf16.msra.mxu0 0
    %1915 = vmatprep.subr.bf16.mxu0 0
    %1916 = vmatpush1.bf16.msra.mxu0 0
    %1917 = vmatprep.subr.bf16.mxu0 0
    %1918 = vmatpush1.bf16.msra.mxu0 0
    %1919 = vmatprep.subr.bf16.mxu0 0
    %1920 = vmatpush1.bf16.msra.mxu0 0
    %1921 = vmatprep.subr.bf16.mxu0 0
    %1922 = vmatpush1.bf16.msra.mxu0 0
    %1923 = vmatprep.mubr.bf16.mxu0 0
    %1924 = vmatmul.mubr.bf16.gmra.mrb[0].mxu0 %v1886
    %v1925 = vpop.f32.mrb[0].mxu0
    %v1926 = vadd.f32 0.0, %v1925
    %v1927 = vpop.f32.mrb[0].mxu0
    %v1928 = vpop.f32.mrb[0].mxu0
    %v1929 = vadd.f32 0.0, %v1928
    %v1930 = vpop.f32.mrb[0].mxu0
    %1931 = vmatprep.mubr.bf16.mxu0 0
    %1932 = vmatmul.mubr.bf16.gmra.mrb[0].mxu0 %v1889
    %v1933 = vpop.f32.mrb[0].mxu0
    %v1934 = vadd.f32 0.0, %v1933
    %v1935 = vpop.f32.mrb[0].mxu0
    %v1936 = vpop.f32.mrb[0].mxu0
    %v1937 = vadd.f32 0.0, %v1936
    %v1938 = vpop.f32.mrb[0].mxu0
    %1939 = vdwg.mxu0
    %v1940 = vadd.f32 %v1857, %v1926
    %v1941 = vadd.f32 %v1858, %v1929
    %v1942 = vadd.f32 %v1859, %v1934
    %v1943 = vadd.f32 %v1860, %v1937
    %v1944 = vld [vmem:[%s6 + $0x30] sm:$0xf]
    %v1945 = vld [vmem:[%s6 + $0x34] sm:$0xf]
    %v1946 = vld [vmem:[%s6 + $0x38] sm:$0xf]
    %v1947 = vld [vmem:[%s6 + $0x3c] sm:$0xf]
    %v1948 = vld [vmem:[%s6 + $0x40] sm:$0xf]
    %v1949 = vld [vmem:[%s6 + $0x44] sm:$0xf]
    %v1956 = vunpack.c.l.b16 %v1944
    %v1957 = vunpack.c.l.b16 %v1945
    %v1958 = vunpack.c.l.b16 %v1946
    %v1959 = vunpack.c.l.b16 %v1947
    %v1960 = vunpack.c.l.b16 %v1948
    %v1961 = vunpack.c.l.b16 %v1949
    %v1962 = vpack.c.b16 %v1957, %v1956
    %v1963 = vpack.c.b16 %v1959, %v1958
    %v1964 = vpack.c.b16 %v1961, %v1960
    %v1969 = vsel %vm1801, %v1752, 0
    %v1972 = vsel %vm1801, %v1753, 0
    %1974 = vmatprep.subr.bf16.mxu0 0
    %1975 = vmatpush1.bf16.msra.mxu0 %v1962
    %1976 = vmatprep.subr.bf16.mxu0 0
    %1977 = vmatpush1.bf16.msra.mxu0 %v1963
    %1978 = vmatprep.subr.bf16.mxu0 0
    %1979 = vmatpush1.bf16.msra.mxu0 %v1964
    %1980 = vmatprep.subr.bf16.mxu0 0
    %1981 = vmatpush1.bf16.msra.mxu0 0
    %1982 = vmatprep.subr.bf16.mxu0 0
    %1983 = vmatpush1.bf16.msra.mxu0 0
    %1984 = vmatprep.subr.bf16.mxu0 0
    %1985 = vmatpush1.bf16.msra.mxu0 0
    %1986 = vmatprep.subr.bf16.mxu0 0
    %1987 = vmatpush1.bf16.msra.mxu0 0
    %1988 = vmatprep.subr.bf16.mxu0 0
    %1989 = vmatpush1.bf16.msra.mxu0 0
    %1990 = vmatprep.subr.bf16.mxu0 0
    %1991 = vmatpush1.bf16.msra.mxu0 0
    %1992 = vmatprep.subr.bf16.mxu0 0
    %1993 = vmatpush1.bf16.msra.mxu0 0
    %1994 = vmatprep.subr.bf16.mxu0 0
    %1995 = vmatpush1.bf16.msra.mxu0 0
    %1996 = vmatprep.subr.bf16.mxu0 0
    %1997 = vmatpush1.bf16.msra.mxu0 0
    %1998 = vmatprep.subr.bf16.mxu0 0
    %1999 = vmatpush1.bf16.msra.mxu0 0
    %2000 = vmatprep.subr.bf16.mxu0 0
    %2001 = vmatpush1.bf16.msra.mxu0 0
    %2002 = vmatprep.subr.bf16.mxu0 0
    %2003 = vmatpush1.bf16.msra.mxu0 0
    %2004 = vmatprep.subr.bf16.mxu0 0
    %2005 = vmatpush1.bf16.msra.mxu0 0
    %2006 = vmatprep.mubr.bf16.mxu0 0
    %2007 = vmatmul.mubr.bf16.gmra.mrb[0].mxu0 %v1969
    %v2008 = vpop.f32.mrb[0].mxu0
    %v2009 = vadd.f32 0.0, %v2008
    %v2010 = vpop.f32.mrb[0].mxu0
    %v2011 = vpop.f32.mrb[0].mxu0
    %v2012 = vadd.f32 0.0, %v2011
    %v2013 = vpop.f32.mrb[0].mxu0
    %2014 = vmatprep.mubr.bf16.mxu0 0
    %2015 = vmatmul.mubr.bf16.gmra.mrb[0].mxu0 %v1972
    %v2016 = vpop.f32.mrb[0].mxu0
    %v2017 = vadd.f32 0.0, %v2016
    %v2018 = vpop.f32.mrb[0].mxu0
    %v2019 = vpop.f32.mrb[0].mxu0
    %v2020 = vadd.f32 0.0, %v2019
    %v2021 = vpop.f32.mrb[0].mxu0
    %2022 = vdwg.mxu0
    %v2023 = vadd.f32 %v1940, %v2009
    %v2024 = vadd.f32 %v1941, %v2012
    %v2025 = vadd.f32 %v1942, %v2017
    %v2026 = vadd.f32 %v1943, %v2020
    %v2027 = vld [vmem:[%s6 + $0x48] sm:$0xf]
    %v2028 = vld [vmem:[%s6 + $0x4c] sm:$0xf]
    %v2029 = vld [vmem:[%s6 + $0x50] sm:$0xf]
    %v2030 = vld [vmem:[%s6 + $0x54] sm:$0xf]
    %v2031 = vld [vmem:[%s6 + $0x58] sm:$0xf]
    %v2032 = vld [vmem:[%s6 + $0x5c] sm:$0xf]
    %v2039 = vunpack.c.l.b16 %v2027
    %v2040 = vunpack.c.l.b16 %v2028
    %v2041 = vunpack.c.l.b16 %v2029
    %v2042 = vunpack.c.l.b16 %v2030
    %v2043 = vunpack.c.l.b16 %v2031
    %v2044 = vunpack.c.l.b16 %v2032
    %v2045 = vpack.c.b16 %v2040, %v2039
    %v2046 = vpack.c.b16 %v2042, %v2041
    %v2047 = vpack.c.b16 %v2044, %v2043
    %v2052 = vsel %vm1801, %v1754, 0
    %v2055 = vsel %vm1801, %v1755, 0
    %2057 = vmatprep.subr.bf16.mxu0 0
    %2058 = vmatpush1.bf16.msra.mxu0 %v2045
    %2059 = vmatprep.subr.bf16.mxu0 0
    %2060 = vmatpush1.bf16.msra.mxu0 %v2046
    %2061 = vmatprep.subr.bf16.mxu0 0
    %2062 = vmatpush1.bf16.msra.mxu0 %v2047
    %2063 = vmatprep.subr.bf16.mxu0 0
    %2064 = vmatpush1.bf16.msra.mxu0 0
    %2065 = vmatprep.subr.bf16.mxu0 0
    %2066 = vmatpush1.bf16.msra.mxu0 0
    %2067 = vmatprep.subr.bf16.mxu0 0
    %2068 = vmatpush1.bf16.msra.mxu0 0
    %2069 = vmatprep.subr.bf16.mxu0 0
    %2070 = vmatpush1.bf16.msra.mxu0 0
    %2071 = vmatprep.subr.bf16.mxu0 0
    %2072 = vmatpush1.bf16.msra.mxu0 0
    %2073 = vmatprep.subr.bf16.mxu0 0
    %2074 = vmatpush1.bf16.msra.mxu0 0
    %2075 = vmatprep.subr.bf16.mxu0 0
    %2076 = vmatpush1.bf16.msra.mxu0 0
    %2077 = vmatprep.subr.bf16.mxu0 0
    %2078 = vmatpush1.bf16.msra.mxu0 0
    %2079 = vmatprep.subr.bf16.mxu0 0
    %2080 = vmatpush1.bf16.msra.mxu0 0
    %2081 = vmatprep.subr.bf16.mxu0 0
    %2082 = vmatpush1.bf16.msra.mxu0 0
    %2083 = vmatprep.subr.bf16.mxu0 0
    %2084 = vmatpush1.bf16.msra.mxu0 0
    %2085 = vmatprep.subr.bf16.mxu0 0
    %2086 = vmatpush1.bf16.msra.mxu0 0
    %2087 = vmatprep.subr.bf16.mxu0 0
    %2088 = vmatpush1.bf16.msra.mxu0 0
    %2089 = vmatprep.mubr.bf16.mxu0 0
    %2090 = vmatmul.mubr.bf16.gmra.mrb[0].mxu0 %v2052
    %v2091 = vpop.f32.mrb[0].mxu0
    %v2092 = vadd.f32 0.0, %v2091
    %v2093 = vpop.f32.mrb[0].mxu0
    %v2094 = vpop.f32.mrb[0].mxu0
    %v2095 = vadd.f32 0.0, %v2094
    %v2096 = vpop.f32.mrb[0].mxu0
    %2097 = vmatprep.mubr.bf16.mxu0 0
    %2098 = vmatmul.mubr.bf16.gmra.mrb[0].mxu0 %v2055
    %v2099 = vpop.f32.mrb[0].mxu0
    %v2100 = vadd.f32 0.0, %v2099
    %v2101 = vpop.f32.mrb[0].mxu0
    %v2102 = vpop.f32.mrb[0].mxu0
    %v2103 = vadd.f32 0.0, %v2102
    %v2104 = vpop.f32.mrb[0].mxu0
    %2105 = vdwg.mxu0
    %v2106 = vadd.f32 %v2023, %v2092
    %v2107 = vadd.f32 %v2024, %v2095
    %v2108 = vadd.f32 %v2025, %v2100
    %v2109 = vadd.f32 %v2026, %v2103
    %v2110 = vld [vmem:[%s6 + $0x60] sm:$0xf]
    %v2111 = vld [vmem:[%s6 + $0x64] sm:$0xf]
    %v2112 = vld [vmem:[%s6 + $0x68] sm:$0xf]
    %v2113 = vld [vmem:[%s6 + $0x6c] sm:$0xf]
    %v2114 = vld [vmem:[%s6 + $0x70] sm:$0xf]
    %v2115 = vld [vmem:[%s6 + $0x74] sm:$0xf]
    %v2122 = vunpack.c.l.b16 %v2110
    %v2123 = vunpack.c.l.b16 %v2111
    %v2124 = vunpack.c.l.b16 %v2112
    %v2125 = vunpack.c.l.b16 %v2113
    %v2126 = vunpack.c.l.b16 %v2114
    %v2127 = vunpack.c.l.b16 %v2115
    %v2128 = vpack.c.b16 %v2123, %v2122
    %v2129 = vpack.c.b16 %v2125, %v2124
    %v2130 = vpack.c.b16 %v2127, %v2126
    %v2135 = vsel %vm1801, %v1756, 0
    %v2138 = vsel %vm1801, %v1757, 0
    %2140 = vmatprep.subr.bf16.mxu0 0
    %2141 = vmatpush1.bf16.msra.mxu0 %v2128
    %2142 = vmatprep.subr.bf16.mxu0 0
    %2143 = vmatpush1.bf16.msra.mxu0 %v2129
    %2144 = vmatprep.subr.bf16.mxu0 0
    %2145 = vmatpush1.bf16.msra.mxu0 %v2130
    %2146 = vmatprep.subr.bf16.mxu0 0
    %2147 = vmatpush1.bf16.msra.mxu0 0
    %2148 = vmatprep.subr.bf16.mxu0 0
    %2149 = vmatpush1.bf16.msra.mxu0 0
    %2150 = vmatprep.subr.bf16.mxu0 0
    %2151 = vmatpush1.bf16.msra.mxu0 0
    %2152 = vmatprep.subr.bf16.mxu0 0
    %2153 = vmatpush1.bf16.msra.mxu0 0
    %2154 = vmatprep.subr.bf16.mxu0 0
    %2155 = vmatpush1.bf16.msra.mxu0 0
    %2156 = vmatprep.subr.bf16.mxu0 0
    %2157 = vmatpush1.bf16.msra.mxu0 0
    %2158 = vmatprep.subr.bf16.mxu0 0
    %2159 = vmatpush1.bf16.msra.mxu0 0
    %2160 = vmatprep.subr.bf16.mxu0 0
    %2161 = vmatpush1.bf16.msra.mxu0 0
    %2162 = vmatprep.subr.bf16.mxu0 0
    %2163 = vmatpush1.bf16.msra.mxu0 0
    %2164 = vmatprep.subr.bf16.mxu0 0
    %2165 = vmatpush1.bf16.msra.mxu0 0
    %2166 = vmatprep.subr.bf16.mxu0 0
    %2167 = vmatpush1.bf16.msra.mxu0 0
    %2168 = vmatprep.subr.bf16.mxu0 0
    %2169 = vmatpush1.bf16.msra.mxu0 0
    %2170 = vmatprep.subr.bf16.mxu0 0
    %2171 = vmatpush1.bf16.msra.mxu0 0
    %2172 = vmatprep.mubr.bf16.mxu0 0
    %2173 = vmatmul.mubr.bf16.gmra.mrb[0].mxu0 %v2135
    %v2174 = vpop.f32.mrb[0].mxu0
    %v2175 = vadd.f32 0.0, %v2174
    %v2176 = vpop.f32.mrb[0].mxu0
    %v2177 = vpop.f32.mrb[0].mxu0
    %v2178 = vadd.f32 0.0, %v2177
    %v2179 = vpop.f32.mrb[0].mxu0
    %2180 = vmatprep.mubr.bf16.mxu0 0
    %2181 = vmatmul.mubr.bf16.gmra.mrb[0].mxu0 %v2138
    %v2182 = vpop.f32.mrb[0].mxu0
    %v2183 = vadd.f32 0.0, %v2182
    %v2184 = vpop.f32.mrb[0].mxu0
    %v2185 = vpop.f32.mrb[0].mxu0
    %v2186 = vadd.f32 0.0, %v2185
    %v2187 = vpop.f32.mrb[0].mxu0
    %2188 = vdwg.mxu0
    %v2189 = vadd.f32 %v2106, %v2175
    %v2190 = vadd.f32 %v2107, %v2178
    %v2191 = vadd.f32 %v2108, %v2183
    %v2192 = vadd.f32 %v2109, %v2186
    %v2193 = vld [vmem:[%s6 + $0x78] sm:$0xf]
    %v2194 = vld [vmem:[%s6 + $0x7c] sm:$0xf]
    %v2195 = vld [vmem:[%s6 + $0x80] sm:$0xf]
    %v2196 = vld [vmem:[%s6 + $0x84] sm:$0xf]
    %v2197 = vld [vmem:[%s6 + $0x88] sm:$0xf]
    %v2198 = vld [vmem:[%s6 + $0x8c] sm:$0xf]
    %v2205 = vunpack.c.l.b16 %v2193
    %v2206 = vunpack.c.l.b16 %v2194
    %v2207 = vunpack.c.l.b16 %v2195
    %v2208 = vunpack.c.l.b16 %v2196
    %v2209 = vunpack.c.l.b16 %v2197
    %v2210 = vunpack.c.l.b16 %v2198
    %v2211 = vpack.c.b16 %v2206, %v2205
    %v2212 = vpack.c.b16 %v2208, %v2207
    %v2213 = vpack.c.b16 %v2210, %v2209
    %v2218 = vsel %vm1801, %v1758, 0
    %v2221 = vsel %vm1801, %v1759, 0
    %2223 = vmatprep.subr.bf16.mxu0 0
    %2224 = vmatpush1.bf16.msra.mxu0 %v2211
    %2225 = vmatprep.subr.bf16.mxu0 0
    %2226 = vmatpush1.bf16.msra.mxu0 %v2212
    %2227 = vmatprep.subr.bf16.mxu0 0
    %2228 = vmatpush1.bf16.msra.mxu0 %v2213
    %2229 = vmatprep.subr.bf16.mxu0 0
    %2230 = vmatpush1.bf16.msra.mxu0 0
    %2231 = vmatprep.subr.bf16.mxu0 0
    %2232 = vmatpush1.bf16.msra.mxu0 0
    %2233 = vmatprep.subr.bf16.mxu0 0
    %2234 = vmatpush1.bf16.msra.mxu0 0
    %2235 = vmatprep.subr.bf16.mxu0 0
    %2236 = vmatpush1.bf16.msra.mxu0 0
    %2237 = vmatprep.subr.bf16.mxu0 0
    %2238 = vmatpush1.bf16.msra.mxu0 0
    %2239 = vmatprep.subr.bf16.mxu0 0
    %2240 = vmatpush1.bf16.msra.mxu0 0
    %2241 = vmatprep.subr.bf16.mxu0 0
    %2242 = vmatpush1.bf16.msra.mxu0 0
    %2243 = vmatprep.subr.bf16.mxu0 0
    %2244 = vmatpush1.bf16.msra.mxu0 0
    %2245 = vmatprep.subr.bf16.mxu0 0
    %2246 = vmatpush1.bf16.msra.mxu0 0
    %2247 = vmatprep.subr.bf16.mxu0 0
    %2248 = vmatpush1.bf16.msra.mxu0 0
    %2249 = vmatprep.subr.bf16.mxu0 0
    %2250 = vmatpush1.bf16.msra.mxu0 0
    %2251 = vmatprep.subr.bf16.mxu0 0
    %2252 = vmatpush1.bf16.msra.mxu0 0
    %2253 = vmatprep.subr.bf16.mxu0 0
    %2254 = vmatpush1.bf16.msra.mxu0 0
    %2255 = vmatprep.mubr.bf16.mxu0 0
    %2256 = vmatmul.mubr.bf16.gmra.mrb[0].mxu0 %v2218
    %v2257 = vpop.f32.mrb[0].mxu0
    %v2258 = vadd.f32 0.0, %v2257
    %v2259 = vpop.f32.mrb[0].mxu0
    %v2260 = vpop.f32.mrb[0].mxu0
    %v2261 = vadd.f32 0.0, %v2260
    %v2262 = vpop.f32.mrb[0].mxu0
    %2263 = vmatprep.mubr.bf16.mxu0 0
    %2264 = vmatmul.mubr.bf16.gmra.mrb[0].mxu0 %v2221
    %v2265 = vpop.f32.mrb[0].mxu0
    %v2266 = vadd.f32 0.0, %v2265
    %v2267 = vpop.f32.mrb[0].mxu0
    %v2268 = vpop.f32.mrb[0].mxu0
    %v2269 = vadd.f32 0.0, %v2268
    %v2270 = vpop.f32.mrb[0].mxu0
    %2271 = vdwg.mxu0
    %v2272 = vadd.f32 %v2189, %v2258
    %v2273 = vadd.f32 %v2190, %v2261
    %v2274 = vadd.f32 %v2191, %v2266
    %v2275 = vadd.f32 %v2192, %v2269
    %v2276 = vld [vmem:[%s6 + $0x90] sm:$0xf]
    %v2277 = vld [vmem:[%s6 + $0x94] sm:$0xf]
    %v2278 = vld [vmem:[%s6 + $0x98] sm:$0xf]
    %v2279 = vld [vmem:[%s6 + $0x9c] sm:$0xf]
    %v2280 = vld [vmem:[%s6 + $0xa0] sm:$0xf]
    %v2281 = vld [vmem:[%s6 + $0xa4] sm:$0xf]
    %v2288 = vunpack.c.l.b16 %v2276
    %v2289 = vunpack.c.l.b16 %v2277
    %v2290 = vunpack.c.l.b16 %v2278
    %v2291 = vunpack.c.l.b16 %v2279
    %v2292 = vunpack.c.l.b16 %v2280
    %v2293 = vunpack.c.l.b16 %v2281
    %v2294 = vpack.c.b16 %v2289, %v2288
    %v2295 = vpack.c.b16 %v2291, %v2290
    %v2296 = vpack.c.b16 %v2293, %v2292
    %v2301 = vsel %vm1801, %v1760, 0
    %v2304 = vsel %vm1801, %v1761, 0
    %2306 = vmatprep.subr.bf16.mxu0 0
    %2307 = vmatpush1.bf16.msra.mxu0 %v2294
    %2308 = vmatprep.subr.bf16.mxu0 0
    %2309 = vmatpush1.bf16.msra.mxu0 %v2295
    %2310 = vmatprep.subr.bf16.mxu0 0
    %2311 = vmatpush1.bf16.msra.mxu0 %v2296
    %2312 = vmatprep.subr.bf16.mxu0 0
    %2313 = vmatpush1.bf16.msra.mxu0 0
    %2314 = vmatprep.subr.bf16.mxu0 0
    %2315 = vmatpush1.bf16.msra.mxu0 0
    %2316 = vmatprep.subr.bf16.mxu0 0
    %2317 = vmatpush1.bf16.msra.mxu0 0
    %2318 = vmatprep.subr.bf16.mxu0 0
    %2319 = vmatpush1.bf16.msra.mxu0 0
    %2320 = vmatprep.subr.bf16.mxu0 0
    %2321 = vmatpush1.bf16.msra.mxu0 0
    %2322 = vmatprep.subr.bf16.mxu0 0
    %2323 = vmatpush1.bf16.msra.mxu0 0
    %2324 = vmatprep.subr.bf16.mxu0 0
    %2325 = vmatpush1.bf16.msra.mxu0 0
    %2326 = vmatprep.subr.bf16.mxu0 0
    %2327 = vmatpush1.bf16.msra.mxu0 0
    %2328 = vmatprep.subr.bf16.mxu0 0
    %2329 = vmatpush1.bf16.msra.mxu0 0
    %2330 = vmatprep.subr.bf16.mxu0 0
    %2331 = vmatpush1.bf16.msra.mxu0 0
    %2332 = vmatprep.subr.bf16.mxu0 0
    %2333 = vmatpush1.bf16.msra.mxu0 0
    %2334 = vmatprep.subr.bf16.mxu0 0
    %2335 = vmatpush1.bf16.msra.mxu0 0
    %2336 = vmatprep.subr.bf16.mxu0 0
    %2337 = vmatpush1.bf16.msra.mxu0 0
    %2338 = vmatprep.mubr.bf16.mxu0 0
    %2339 = vmatmul.mubr.bf16.gmra.mrb[0].mxu0 %v2301
    %v2340 = vpop.f32.mrb[0].mxu0
    %v2341 = vadd.f32 0.0, %v2340
    %v2342 = vpop.f32.mrb[0].mxu0
    %v2343 = vpop.f32.mrb[0].mxu0
    %v2344 = vadd.f32 0.0, %v2343
    %v2345 = vpop.f32.mrb[0].mxu0
    %2346 = vmatprep.mubr.bf16.mxu0 0
    %2347 = vmatmul.mubr.bf16.gmra.mrb[0].mxu0 %v2304
    %v2348 = vpop.f32.mrb[0].mxu0
    %v2349 = vadd.f32 0.0, %v2348
    %v2350 = vpop.f32.mrb[0].mxu0
    %v2351 = vpop.f32.mrb[0].mxu0
    %v2352 = vadd.f32 0.0, %v2351
    %v2353 = vpop.f32.mrb[0].mxu0
    %2354 = vdwg.mxu0
    %v2355 = vadd.f32 %v2272, %v2341
    %v2356 = vadd.f32 %v2273, %v2344
    %v2357 = vadd.f32 %v2274, %v2349
    %v2358 = vadd.f32 %v2275, %v2352
    %v2359 = vld [vmem:[%s6 + $0xa8] sm:$0xf]
    %v2360 = vld [vmem:[%s6 + $0xac] sm:$0xf]
    %v2361 = vld [vmem:[%s6 + $0xb0] sm:$0xf]
    %v2362 = vld [vmem:[%s6 + $0xb4] sm:$0xf]
    %v2363 = vld [vmem:[%s6 + $0xb8] sm:$0xf]
    %v2364 = vld [vmem:[%s6 + $0xbc] sm:$0xf]
    %v2371 = vunpack.c.l.b16 %v2359
    %v2372 = vunpack.c.l.b16 %v2360
    %v2373 = vunpack.c.l.b16 %v2361
    %v2374 = vunpack.c.l.b16 %v2362
    %v2375 = vunpack.c.l.b16 %v2363
    %v2376 = vunpack.c.l.b16 %v2364
    %v2377 = vpack.c.b16 %v2372, %v2371
    %v2378 = vpack.c.b16 %v2374, %v2373
    %v2379 = vpack.c.b16 %v2376, %v2375
    %v2384 = vsel %vm1801, %v1762, 0
    %v2387 = vsel %vm1801, %v1763, 0
    %2389 = vmatprep.subr.bf16.mxu0 0
    %2390 = vmatpush1.bf16.msra.mxu0 %v2377
    %2391 = vmatprep.subr.bf16.mxu0 0
    %2392 = vmatpush1.bf16.msra.mxu0 %v2378
    %2393 = vmatprep.subr.bf16.mxu0 0
    %2394 = vmatpush1.bf16.msra.mxu0 %v2379
    %2395 = vmatprep.subr.bf16.mxu0 0
    %2396 = vmatpush1.bf16.msra.mxu0 0
    %2397 = vmatprep.subr.bf16.mxu0 0
    %2398 = vmatpush1.bf16.msra.mxu0 0
    %2399 = vmatprep.subr.bf16.mxu0 0
    %2400 = vmatpush1.bf16.msra.mxu0 0
    %2401 = vmatprep.subr.bf16.mxu0 0
    %2402 = vmatpush1.bf16.msra.mxu0 0
    %2403 = vmatprep.subr.bf16.mxu0 0
    %2404 = vmatpush1.bf16.msra.mxu0 0
    %2405 = vmatprep.subr.bf16.mxu0 0
    %2406 = vmatpush1.bf16.msra.mxu0 0
    %2407 = vmatprep.subr.bf16.mxu0 0
    %2408 = vmatpush1.bf16.msra.mxu0 0
    %2409 = vmatprep.subr.bf16.mxu0 0
    %2410 = vmatpush1.bf16.msra.mxu0 0
    %2411 = vmatprep.subr.bf16.mxu0 0
    %2412 = vmatpush1.bf16.msra.mxu0 0
    %2413 = vmatprep.subr.bf16.mxu0 0
    %2414 = vmatpush1.bf16.msra.mxu0 0
    %2415 = vmatprep.subr.bf16.mxu0 0
    %2416 = vmatpush1.bf16.msra.mxu0 0
    %2417 = vmatprep.subr.bf16.mxu0 0
    %2418 = vmatpush1.bf16.msra.mxu0 0
    %2419 = vmatprep.subr.bf16.mxu0 0
    %2420 = vmatpush1.bf16.msra.mxu0 0
    %2421 = vmatprep.mubr.bf16.mxu0 0
    %2422 = vmatmul.mubr.bf16.gmra.mrb[0].mxu0 %v2384
    %v2423 = vpop.f32.mrb[0].mxu0
    %v2424 = vadd.f32 0.0, %v2423
    %v2425 = vpop.f32.mrb[0].mxu0
    %v2426 = vpop.f32.mrb[0].mxu0
    %v2427 = vadd.f32 0.0, %v2426
    %v2428 = vpop.f32.mrb[0].mxu0
    %2429 = vmatprep.mubr.bf16.mxu0 0
    %2430 = vmatmul.mubr.bf16.gmra.mrb[0].mxu0 %v2387
    %v2431 = vpop.f32.mrb[0].mxu0
    %v2432 = vadd.f32 0.0, %v2431
    %v2433 = vpop.f32.mrb[0].mxu0
    %v2434 = vpop.f32.mrb[0].mxu0
    %v2435 = vadd.f32 0.0, %v2434
    %v2436 = vpop.f32.mrb[0].mxu0
    %2437 = vdwg.mxu0
    %v2438 = vadd.f32 %v2355, %v2424
    %v2439 = vadd.f32 %v2356, %v2427
    %v2440 = vadd.f32 %v2357, %v2432
    %v2441 = vadd.f32 %v2358, %v2435
    %v2442 = vld [vmem:[%s6 + $0xc0] sm:$0xf]
    %v2443 = vld [vmem:[%s6 + $0xc4] sm:$0xf]
    %v2444 = vld [vmem:[%s6 + $0xc8] sm:$0xf]
    %v2445 = vld [vmem:[%s6 + $0xcc] sm:$0xf]
    %v2446 = vld [vmem:[%s6 + $0xd0] sm:$0xf]
    %v2447 = vld [vmem:[%s6 + $0xd4] sm:$0xf]
    %v2454 = vunpack.c.l.b16 %v2442
    %v2455 = vunpack.c.l.b16 %v2443
    %v2456 = vunpack.c.l.b16 %v2444
    %v2457 = vunpack.c.l.b16 %v2445
    %v2458 = vunpack.c.l.b16 %v2446
    %v2459 = vunpack.c.l.b16 %v2447
    %v2460 = vpack.c.b16 %v2455, %v2454
    %v2461 = vpack.c.b16 %v2457, %v2456
    %v2462 = vpack.c.b16 %v2459, %v2458
    %v2467 = vsel %vm1801, %v1764, 0
    %v2470 = vsel %vm1801, %v1765, 0
    %2472 = vmatprep.subr.bf16.mxu0 0
    %2473 = vmatpush1.bf16.msra.mxu0 %v2460
    %2474 = vmatprep.subr.bf16.mxu0 0
    %2475 = vmatpush1.bf16.msra.mxu0 %v2461
    %2476 = vmatprep.subr.bf16.mxu0 0
    %2477 = vmatpush1.bf16.msra.mxu0 %v2462
    %2478 = vmatprep.subr.bf16.mxu0 0
    %2479 = vmatpush1.bf16.msra.mxu0 0
    %2480 = vmatprep.subr.bf16.mxu0 0
    %2481 = vmatpush1.bf16.msra.mxu0 0
    %2482 = vmatprep.subr.bf16.mxu0 0
    %2483 = vmatpush1.bf16.msra.mxu0 0
    %2484 = vmatprep.subr.bf16.mxu0 0
    %2485 = vmatpush1.bf16.msra.mxu0 0
    %2486 = vmatprep.subr.bf16.mxu0 0
    %2487 = vmatpush1.bf16.msra.mxu0 0
    %2488 = vmatprep.subr.bf16.mxu0 0
    %2489 = vmatpush1.bf16.msra.mxu0 0
    %2490 = vmatprep.subr.bf16.mxu0 0
    %2491 = vmatpush1.bf16.msra.mxu0 0
    %2492 = vmatprep.subr.bf16.mxu0 0
    %2493 = vmatpush1.bf16.msra.mxu0 0
    %2494 = vmatprep.subr.bf16.mxu0 0
    %2495 = vmatpush1.bf16.msra.mxu0 0
    %2496 = vmatprep.subr.bf16.mxu0 0
    %2497 = vmatpush1.bf16.msra.mxu0 0
    %2498 = vmatprep.subr.bf16.mxu0 0
    %2499 = vmatpush1.bf16.msra.mxu0 0
    %2500 = vmatprep.subr.bf16.mxu0 0
    %2501 = vmatpush1.bf16.msra.mxu0 0
    %2502 = vmatprep.subr.bf16.mxu0 0
    %2503 = vmatpush1.bf16.msra.mxu0 0
    %2504 = vmatprep.mubr.bf16.mxu0 0
    %2505 = vmatmul.mubr.bf16.gmra.mrb[0].mxu0 %v2467
    %v2506 = vpop.f32.mrb[0].mxu0
    %v2507 = vadd.f32 0.0, %v2506
    %v2508 = vpop.f32.mrb[0].mxu0
    %v2509 = vpop.f32.mrb[0].mxu0
    %v2510 = vadd.f32 0.0, %v2509
    %v2511 = vpop.f32.mrb[0].mxu0
    %2512 = vmatprep.mubr.bf16.mxu0 0
    %2513 = vmatmul.mubr.bf16.gmra.mrb[0].mxu0 %v2470
    %v2514 = vpop.f32.mrb[0].mxu0
    %v2515 = vadd.f32 0.0, %v2514
    %v2516 = vpop.f32.mrb[0].mxu0
    %v2517 = vpop.f32.mrb[0].mxu0
    %v2518 = vadd.f32 0.0, %v2517
    %v2519 = vpop.f32.mrb[0].mxu0
    %2520 = vdwg.mxu0
    %v2521 = vadd.f32 %v2438, %v2507
    %v2522 = vadd.f32 %v2439, %v2510
    %v2523 = vadd.f32 %v2440, %v2515
    %v2524 = vadd.f32 %v2441, %v2518
    %2525 = vst.msk [vmem:[#allocation2] sm:$0xff] %vm72, %v2521
    %2526 = vst.msk [vmem:[#allocation2 + $0x8] sm:$0xff] %vm72, %v2522
    %2527 = vst.msk [vmem:[#allocation2 + $0x10] sm:$0xff] %vm72, %v2523
    %2528 = vst.msk [vmem:[#allocation2 + $0x18] sm:$0xff] %vm72, %v2524
    // Predicated region
    $region50: #{_post_fft_forward.1} parent=1 // pred_check
      _
    $region51: #{_post_fft_forward.1} parent=1 // pred_check_branch
      %2530 = sbr.rel (0) target = $region53
    $region52: #{_post_fft_forward.1} parent=1 // pred_region
      %s2532 = ssub.s32 512, 512
      %2533 = vsyncadd [#allocation3], %s2532
      %s2534 = sshll.u32 [#allocation2], 4
      %s2535 = int_to_ptr.vmem [resolvable:$true] %s2534
      %2540 = dma.vmem_to_hbm [thread:$0]  %s2535, 512, %s12, [#allocation3], 128, 128, 8
    $region53: #{_post_fft_forward.1} parent=1 // pred_fallthru
      _
    // Predicated region
    $region54: #{_post_fft_forward.1} parent=1 // pred_check
      _
    $region55: #{_post_fft_forward.1} parent=1 // pred_check_branch
      %2542 = sbr.rel (0) target = $region57
    $region56: #{_post_fft_forward.1} parent=1 // pred_region
      %2543 = dma.done [#allocation3], 512
    $region57: #{_post_fft_forward.1} parent=1 // pred_fallthru
      _
    %2544 = vsyncpa [#allocation3], 1

</llo_original>
